<compile_context>
chip_gen: v7x
topology: tpu7x:2x2x1
jax: 0.10.0
libtpu: 0.0.40
codegen_flags: <defaults>
</compile_context>

<pallas_src>
import functools

import jax
import jax.numpy as jnp
from jax.experimental import pallas as pl
from jax.experimental.pallas import tpu as pltpu


# ----------------------------------------------------------------------------
# Kernel
# ----------------------------------------------------------------------------
def _attention_kernel(enc_ref, dec_ref, we_ref, wd_ref, wf_ref, bias_ref,
                      awe_ref, alpha_ref, *, p_valid, p_chunk):
    # enc_ref:  (BB, P, E)   dec_ref:  (BB, D)
    # we_ref:   (E, A)       wd_ref:   (D, A)
    # wf_ref:   (1, A) f32   bias_ref: (1, A) f32  (= be + bd combined)
    # awe_ref:  (BB, E) f32  alpha_ref:(BB, P) f32
    BB, P, E = enc_ref.shape
    A = we_ref.shape[1]

    enc = enc_ref[...]                                          # (BB, P, E)
    dec = dec_ref[...]                                          # (BB, D)

    # att2 = decoder_att(decoder_hidden) for the whole block (+ combined bias).
    att2 = jnp.dot(dec, wd_ref[...], preferred_element_type=jnp.float32)
    att2 = att2 + bias_ref[...]                                 # (BB, A) f32

    # full_att weight as a hoisted (1, 1, A) row (VPU reduce, no N=1 matmul).
    wf_row = wf_ref[...].astype(jnp.float32).reshape(1, 1, A)

    # Pre-softmax scores, chunked over the pixel axis so the (BB, pc, A)
    # intermediate stays vreg/VMEM friendly at production P/A sizes.
    score_chunks = []
    for c0 in range(0, P, p_chunk):
        pc = min(p_chunk, P - c0)
        enc_c = enc[:, c0:c0 + pc, :].reshape(BB * pc, E)       # layout-free collapse
        att1 = jnp.dot(enc_c, we_ref[...],
                       preferred_element_type=jnp.float32)      # (BB*pc, A) on the MXU
        att1 = att1.reshape(BB, pc, A)
        h = jnp.maximum(att1 + att2[:, None, :], 0.0)           # relu
        score_chunks.append(jnp.sum(h * wf_row, axis=-1))       # (BB, pc)
    if len(score_chunks) == 1:
        att = score_chunks[0]
    else:
        att = jnp.concatenate(score_chunks, axis=-1)            # (BB, P)

    # Mask pad pixels (only emitted when P was padded in the wrapper).
    if p_valid < P:
        col = jax.lax.broadcasted_iota(jnp.int32, (BB, P), 1)
        att = jnp.where(col < p_valid, att, -jnp.inf)

    # softmax over the pixel axis (dim=1 in the PyTorch module), exact norm.
    m = jnp.max(att, axis=-1, keepdims=True)
    e = jnp.exp(att - m)
    s = jnp.sum(e, axis=-1, keepdims=True)
    alpha = e / s                                               # (BB, P)
    alpha_ref[...] = alpha

    # attention-weighted encoding: broadcast multiply + sublane reduce.
    awe = jnp.sum(enc.astype(jnp.float32) * alpha[:, :, None], axis=1)  # (BB, E)
    awe_ref[...] = awe.astype(awe_ref.dtype)


# ----------------------------------------------------------------------------
# Wrapper
# ----------------------------------------------------------------------------
def _default_vmem_budget():
    """Per-step VMEM budget used for picking the batch block (with headroom)."""
    cap = 64 * 1024 * 1024                     # conservative (v7x has 64 MiB)
    try:
        cap = int(pltpu.get_tpu_info().vmem_capacity_bytes)
    except Exception:
        pass
    return int(cap * 0.35)


def _pick_block_b(B, P, E, D, itemsize, budget):
    """Largest batch block (multiple of 8, or == B) whose per-step working set
    fits the budget; prefers a grid of length >= 2 for megacore sharding."""
    cands = []
    for bb in range(1, B + 1):
        if B % bb:
            continue
        if bb % 8 != 0 and bb != B:
            continue                            # sublane rule on 2-D (BB, .) blocks
        per_step = (2 * bb * P * E * itemsize   # enc block, double-buffered
                    + 2 * bb * D * itemsize     # dec block
                    + 2 * bb * (E + P) * 4)     # f32 outputs
        if per_step <= budget:
            cands.append(bb)
    if not cands:
        for bb in range(1, B + 1):
            if B % bb == 0 and (bb % 8 == 0 or bb == B):
                return bb
        return B
    multi = [bb for bb in cands if B // bb >= 2]
    return max(multi) if multi else max(cands)


def attention_forward(encoder_out, decoder_hidden, params, *, block_b=None,
                      matmul_dtype=jnp.float32):
    """Returns (attention_weighted_encoding (B, E) f32, alpha (B, P) f32)."""
    B, P, E = encoder_out.shape
    D = decoder_hidden.shape[1]
    A = params["we"].shape[1]

    # Pad the pixel axis to a sublane multiple so (BB,P,E)->(BB*P,E) is layout-free.
    P_pad = ((P + 7) // 8) * 8
    if P_pad != P:
        encoder_out = jnp.pad(encoder_out, ((0, 0), (0, P_pad - P), (0, 0)))

    itemsize = jnp.dtype(matmul_dtype).itemsize
    enc = encoder_out.astype(matmul_dtype)
    dec = decoder_hidden.astype(matmul_dtype)
    we = params["we"].astype(matmul_dtype)                      # (E, A)
    wd = params["wd"].astype(matmul_dtype)                      # (D, A)
    wf_row = params["wf"].T.astype(jnp.float32)                 # (1, A)
    bias = (params["be"] + params["bd"]).astype(jnp.float32)    # (1, A)
    # full_att bias params["bf"] cancels under the softmax -> dropped.

    if block_b is None:
        block_b = _pick_block_b(B, P_pad, E, D, itemsize, _default_vmem_budget())
    BB = block_b
    assert B % BB == 0, "batch must be divisible by the batch block"
    # TODO(synk): ragged batches need wrapper-side padding of B (tail masking).

    # Pixel chunk so the live (BB, p_chunk, A) f32 intermediate stays ~<= 1 MiB.
    p_chunk = (1 << 20) // max(1, BB * A * 4)
    p_chunk = min(P_pad, max(8, (p_chunk // 8) * 8))

    # Conservative per-step VMEM estimate -> scoped limit (clamped to [32, 64] MiB).
    interm = (4 * BB * p_chunk * A * 4          # att1 / relu chunk temporaries (f32)
              + BB * P_pad * E * 4              # awe broadcast-multiply temp (f32)
              + 4 * BB * P_pad * 4)             # scores / alpha
    per_step = (2 * BB * P_pad * E * itemsize
                + 2 * BB * D * itemsize
                + 2 * (E * A + D * A) * itemsize + 4 * A * 4
                + 2 * BB * (E + P_pad) * 4
                + interm)
    vmem_limit = int(min(max(2 * per_step, 32 * 1024 * 1024), 64 * 1024 * 1024))

    kernel = functools.partial(_attention_kernel, p_valid=P, p_chunk=p_chunk)

    awe, alpha = pl.pallas_call(
        kernel,
        out_shape=(
            jax.ShapeDtypeStruct((B, E), jnp.float32),
            jax.ShapeDtypeStruct((B, P_pad), jnp.float32),
        ),
        grid=(B // BB,),
        in_specs=[
            pl.BlockSpec((BB, P_pad, E), lambda i: (i, 0, 0)),  # encoder_out block
            pl.BlockSpec((BB, D), lambda i: (i, 0)),            # decoder_hidden block
            pl.BlockSpec((E, A), lambda i: (0, 0)),             # encoder_att weight
            pl.BlockSpec((D, A), lambda i: (0, 0)),             # decoder_att weight
            pl.BlockSpec((1, A), lambda i: (0, 0)),             # full_att weight row
            pl.BlockSpec((1, A), lambda i: (0, 0)),             # combined bias
        ],
        out_specs=[
            pl.BlockSpec((BB, E), lambda i: (i, 0)),
            pl.BlockSpec((BB, P_pad), lambda i: (i, 0)),
        ],
        compiler_params=pltpu.CompilerParams(
            dimension_semantics=("parallel",),                  # batch blocks -> both TCs
            vmem_limit_bytes=vmem_limit,
        ),
    )(enc, dec, we, wd, wf_row, bias)

    if P_pad != P:
        alpha = alpha[:, :P]
    return awe, alpha


# ----------------------------------------------------------------------------
# Pure-JAX reference (mirrors the PyTorch forward) and param init
# ----------------------------------------------------------------------------
def attention_reference(encoder_out, decoder_hidden, params):
    att1 = encoder_out @ params["we"] + params["be"]                  # (B, P, A)
    att2 = decoder_hidden @ params["wd"] + params["bd"]               # (B, A)
    h = jnp.maximum(att1 + att2[:, None, :], 0.0)                     # (B, P, A)
    att = (h @ params["wf"])[..., 0] + params["bf"][0, 0]             # (B, P)
    alpha = jax.nn.softmax(att, axis=1)                               # (B, P)
    awe = jnp.sum(encoder_out * alpha[:, :, None], axis=1)            # (B, E)
    return awe, alpha


def init_params(key, encoder_dim, decoder_dim, attention_dim):
    ks = jax.random.split(key, 6)
    scale = 0.1
    return {
        "we": scale * jax.random.normal(ks[0], (encoder_dim, attention_dim), jnp.float32),
        "be": scale * jax.random.normal(ks[1], (1, attention_dim), jnp.float32),
        "wd": scale * jax.random.normal(ks[2], (decoder_dim, attention_dim), jnp.float32),
        "bd": scale * jax.random.normal(ks[3], (1, attention_dim), jnp.float32),
        "wf": scale * jax.random.normal(ks[4], (attention_dim, 1), jnp.float32),
        "bf": scale * jax.random.normal(ks[5], (1, 1), jnp.float32),
    }


if __name__ == "__main__":
    # batch, num_pixels, encoder_dim, decoder_dim, attention_dim
    B, P, E, D, A = 16, 16, 32, 32, 32

    key = jax.random.PRNGKey(0)
    k_enc, k_dec, k_par = jax.random.split(key, 3)
    encoder_out = jax.random.normal(k_enc, (B, P, E), jnp.float32)
    decoder_hidden = jax.random.normal(k_dec, (B, D), jnp.float32)
    params = init_params(k_par, E, D, A)

    awe_ref, alpha_ref = attention_reference(encoder_out, decoder_hidden, params)

    # f32 path: strict check against the reference semantics.
    awe, alpha = attention_forward(encoder_out, decoder_hidden, params,
                                   matmul_dtype=jnp.float32)
    awe = jax.block_until_ready(awe)
    alpha = jax.block_until_ready(alpha)
    assert awe.shape == (B, E) and alpha.shape == (B, P)
    assert jnp.allclose(alpha, alpha_ref, atol=2e-3, rtol=2e-3), "alpha mismatch"
    assert jnp.allclose(awe, awe_ref, atol=2e-3, rtol=2e-3), "awe mismatch"

    # bf16 matmul path (production perf mode): looser numeric check.
    awe16, alpha16 = attention_forward(encoder_out, decoder_hidden, params,
                                       matmul_dtype=jnp.bfloat16)
    awe16 = jax.block_until_ready(awe16)
    alpha16 = jax.block_until_ready(alpha16)
    assert jnp.allclose(alpha16, alpha_ref, atol=5e-2, rtol=5e-2), "alpha (bf16) mismatch"
    assert jnp.allclose(awe16, awe_ref, atol=5e-2, rtol=5e-2), "awe (bf16) mismatch"

    print("KERNEL_OK")
</pallas_src>

<mosaic_0001>
module attributes {stable_mosaic.version = 11 : i64} {
  func.func @_attention_kernel(%arg0: i32, %arg1: memref<8x16x32xf32, #tpu.memory_space<vmem>>, %arg2: memref<8x32xf32, #tpu.memory_space<vmem>>, %arg3: memref<32x32xf32, #tpu.memory_space<vmem>>, %arg4: memref<32x32xf32, #tpu.memory_space<vmem>>, %arg5: memref<1x32xf32, #tpu.memory_space<vmem>>, %arg6: memref<1x32xf32, #tpu.memory_space<vmem>>, %arg7: memref<8x32xf32, #tpu.memory_space<vmem>>, %arg8: memref<8x16xf32, #tpu.memory_space<vmem>>) attributes {dimension_semantics = [#tpu.dimension_semantics<parallel>], iteration_bounds = array<i64: 2>, scalar_prefetch = 0 : i64, scratch_operands = 0 : i64, tpu.core_type = #tpu.core_type<tc>, window_params = [{transform_indices = @transform_0, window_bounds = array<i64: 8, 16, 32>}, {transform_indices = @transform_1, window_bounds = array<i64: 8, 32>}, {pipeline_mode = #tpu.pipeline_mode<synchronous>, transform_indices = @transform_2, window_bounds = array<i64: 32, 32>}, {pipeline_mode = #tpu.pipeline_mode<synchronous>, transform_indices = @transform_3, window_bounds = array<i64: 32, 32>}, {pipeline_mode = #tpu.pipeline_mode<synchronous>, transform_indices = @transform_4, window_bounds = array<i64: 1, 32>}, {pipeline_mode = #tpu.pipeline_mode<synchronous>, transform_indices = @transform_5, window_bounds = array<i64: 1, 32>}, {transform_indices = @transform_6, window_bounds = array<i64: 8, 32>}, {transform_indices = @transform_7, window_bounds = array<i64: 8, 16>}]} {
    %c0 = arith.constant 0 : index
    %c0_0 = arith.constant 0 : index
    %c0_1 = arith.constant 0 : index
    %0 = vector.load %arg1[%c0, %c0_0, %c0_1] : memref<8x16x32xf32, #tpu.memory_space<vmem>>, vector<8x16x32xf32>
    %c0_2 = arith.constant 0 : index
    %c0_3 = arith.constant 0 : index
    %1 = vector.load %arg2[%c0_2, %c0_3] : memref<8x32xf32, #tpu.memory_space<vmem>>, vector<8x32xf32>
    %c0_4 = arith.constant 0 : index
    %c0_5 = arith.constant 0 : index
    %2 = vector.load %arg4[%c0_4, %c0_5] : memref<32x32xf32, #tpu.memory_space<vmem>>, vector<32x32xf32>
    %cst = arith.constant dense<0.000000e+00> : vector<8x32xf32>
    %3 = tpu.matmul %1, %2, %cst {dimension_numbers = #tpu.dot_dimension_numbers<[1], [0], [0], [1], [0, 0, 1, 1], [], []>} : vector<8x32xf32>, vector<32x32xf32>, vector<8x32xf32> -> vector<8x32xf32>
    %c0_6 = arith.constant 0 : index
    %c0_7 = arith.constant 0 : index
    %4 = vector.load %arg6[%c0_6, %c0_7] : memref<1x32xf32, #tpu.memory_space<vmem>>, vector<1x32xf32>
    %5 = vector.broadcast %4 : vector<1x32xf32> to vector<8x32xf32>
    %6 = arith.addf %3, %5 : vector<8x32xf32>
    %c0_8 = arith.constant 0 : index
    %c0_9 = arith.constant 0 : index
    %7 = vector.load %arg5[%c0_8, %c0_9] : memref<1x32xf32, #tpu.memory_space<vmem>>, vector<1x32xf32>
    %8 = vector.shape_cast %7 : vector<1x32xf32> to vector<1x1x32xf32>
    %9 = vector.shape_cast %0 : vector<8x16x32xf32> to vector<128x32xf32>
    %c0_10 = arith.constant 0 : index
    %c0_11 = arith.constant 0 : index
    %10 = vector.load %arg3[%c0_10, %c0_11] : memref<32x32xf32, #tpu.memory_space<vmem>>, vector<32x32xf32>
    %cst_12 = arith.constant dense<0.000000e+00> : vector<128x32xf32>
    %11 = tpu.matmul %9, %10, %cst_12 {dimension_numbers = #tpu.dot_dimension_numbers<[1], [0], [0], [1], [0, 0, 1, 1], [], []>} : vector<128x32xf32>, vector<32x32xf32>, vector<128x32xf32> -> vector<128x32xf32>
    %12 = vector.shape_cast %11 : vector<128x32xf32> to vector<8x16x32xf32>
    %13 = vector.shape_cast %6 : vector<8x32xf32> to vector<8x1x32xf32>
    %14 = vector.broadcast %13 : vector<8x1x32xf32> to vector<8x16x32xf32>
    %15 = arith.addf %12, %14 : vector<8x16x32xf32>
    %cst_13 = arith.constant 0.000000e+00 : f32
    %16 = vector.broadcast %cst_13 : f32 to vector<8x16x32xf32>
    %17 = arith.maximumf %15, %16 : vector<8x16x32xf32>
    %18 = vector.broadcast %8 : vector<1x1x32xf32> to vector<8x16x32xf32>
    %19 = arith.mulf %17, %18 : vector<8x16x32xf32>
    %cst_14 = arith.constant dense<0.000000e+00> : vector<8x16xf32>
    %20 = vector.multi_reduction <add>, %19, %cst_14 [2] : vector<8x16x32xf32> to vector<8x16xf32>
    %cst_15 = arith.constant dense<0xFF800000> : vector<8xf32>
    %21 = vector.multi_reduction <maximumf>, %20, %cst_15 [1] : vector<8x16xf32> to vector<8xf32>
    %22 = vector.shape_cast %21 : vector<8xf32> to vector<8x1xf32>
    %23 = vector.broadcast %22 : vector<8x1xf32> to vector<8x16xf32>
    %24 = arith.subf %20, %23 : vector<8x16xf32>
    %25 = math.exp %24 : vector<8x16xf32>
    %cst_16 = arith.constant dense<0.000000e+00> : vector<8xf32>
    %26 = vector.multi_reduction <add>, %25, %cst_16 [1] : vector<8x16xf32> to vector<8xf32>
    %27 = vector.shape_cast %26 : vector<8xf32> to vector<8x1xf32>
    %28 = vector.broadcast %27 : vector<8x1xf32> to vector<8x16xf32>
    %29 = arith.divf %25, %28 : vector<8x16xf32>
    %c0_17 = arith.constant 0 : index
    %c0_18 = arith.constant 0 : index
    %30 = vector.load %arg8[%c0_17, %c0_18] : memref<8x16xf32, #tpu.memory_space<vmem>>, vector<8x16xf32>
    tpu.vector_store %arg8[%c0_17, %c0_18], %29 {strides = array<i32>} : memref<8x16xf32, #tpu.memory_space<vmem>>, vector<8x16xf32>,
    %31 = vector.shape_cast %29 : vector<8x16xf32> to vector<8x16x1xf32>
    %32 = vector.broadcast %31 : vector<8x16x1xf32> to vector<8x16x32xf32>
    %33 = arith.mulf %0, %32 : vector<8x16x32xf32>
    %cst_19 = arith.constant dense<0.000000e+00> : vector<8x32xf32>
    %34 = vector.multi_reduction <add>, %33, %cst_19 [1] : vector<8x16x32xf32> to vector<8x32xf32>
    %c0_20 = arith.constant 0 : index
    %c0_21 = arith.constant 0 : index
    %35 = vector.load %arg7[%c0_20, %c0_21] : memref<8x32xf32, #tpu.memory_space<vmem>>, vector<8x32xf32>
    tpu.vector_store %arg7[%c0_20, %c0_21], %34 {strides = array<i32>} : memref<8x32xf32, #tpu.memory_space<vmem>>, vector<8x32xf32>,
    return
  }
  func.func @transform_0(%arg0: i32) -> (i32, i32, i32) {
    %c0_i32 = arith.constant 0 : i32
    %c0_i32_0 = arith.constant 0 : i32
    %c0_i32_1 = arith.constant 0 : i32
    return %arg0, %c0_i32, %c0_i32_0 : i32, i32, i32
  }
  func.func @transform_1(%arg0: i32) -> (i32, i32) {
    %c0_i32 = arith.constant 0 : i32
    %c0_i32_0 = arith.constant 0 : i32
    return %arg0, %c0_i32 : i32, i32
  }
  func.func @transform_2(%arg0: i32) -> (i32, i32) {
    %c0_i32 = arith.constant 0 : i32
    %c0_i32_0 = arith.constant 0 : i32
    %c0_i32_1 = arith.constant 0 : i32
    return %c0_i32, %c0_i32_0 : i32, i32
  }
  func.func @transform_3(%arg0: i32) -> (i32, i32) {
    %c0_i32 = arith.constant 0 : i32
    %c0_i32_0 = arith.constant 0 : i32
    %c0_i32_1 = arith.constant 0 : i32
    return %c0_i32, %c0_i32_0 : i32, i32
  }
  func.func @transform_4(%arg0: i32) -> (i32, i32) {
    %c0_i32 = arith.constant 0 : i32
    %c0_i32_0 = arith.constant 0 : i32
    %c0_i32_1 = arith.constant 0 : i32
    return %c0_i32, %c0_i32_0 : i32, i32
  }
  func.func @transform_5(%arg0: i32) -> (i32, i32) {
    %c0_i32 = arith.constant 0 : i32
    %c0_i32_0 = arith.constant 0 : i32
    %c0_i32_1 = arith.constant 0 : i32
    return %c0_i32, %c0_i32_0 : i32, i32
  }
  func.func @transform_6(%arg0: i32) -> (i32, i32) {
    %c0_i32 = arith.constant 0 : i32
    %c0_i32_0 = arith.constant 0 : i32
    return %arg0, %c0_i32 : i32, i32
  }
  func.func @transform_7(%arg0: i32) -> (i32, i32) {
    %c0_i32 = arith.constant 0 : i32
    %c0_i32_0 = arith.constant 0 : i32
    return %arg0, %c0_i32 : i32, i32
  }
}

</mosaic_0001>

<llo_original>
// kernel: tpu_custom_call.1
$region0: #{tpu_custom_call.1}
  #allocation0 [shape = 'u32[]', space=smem, size = 0x4, offset = 0x4, fixed_abs, tag = 'smem constant byte address 0x4 - core index']
  #allocation1 [shape = 'u32[144,128]{1,0:T(1,128)}', space=vmem, size = 0x12000, scoped, tag = 'internal scratch']
  %s0 = inlined_call_operand.hbm [shape: f32[16,16,32], index: 0, kind: input, shape index: {}]
  %s1 = inlined_call_operand.hbm [shape: f32[16,32], index: 1, kind: input, shape index: {}]
  %s2 = inlined_call_operand.hbm [shape: f32[32,32], index: 2, kind: input, shape index: {}]
  %s3 = inlined_call_operand.hbm [shape: f32[32,32], index: 3, kind: input, shape index: {}]
  %s4 = inlined_call_operand.vmem [shape: f32[1,32], index: 4, kind: input, shape index: {}]
  %s5 = inlined_call_operand.vmem [shape: f32[1,32], index: 5, kind: input, shape index: {}]
  %s6 = inlined_call_operand.hbm [shape: f32[16,32], index: 6, kind: output, shape index: {0}]
  %s7 = inlined_call_operand.hbm [shape: f32[16,16], index: 7, kind: output, shape index: {1}]
  %8 = xla_tuple %s6, %s7
  %s9 = sld [smem:[#allocation0]]
  $region81: #{tpu_custom_call.1} parent=0
    _
  %s11 = ssub.s32 1, %s9
  %s12 = scalar_select 0, %s11, %s9
  $region1: #{tpu_custom_call.1} parent=0
    #allocation2 [shape = 'u8[131072]{0}', space=vmem, size = 0x20000, scoped, tag = 'input window, operand 0']
    #allocation3 [shape = 's32[2]{0}', space=sflag, size = 0x8, scoped, tag = 'scoped memory for tpu_custom_call.1']
    #allocation4 [shape = 's32[2]{0}', space=sflag, size = 0x8, scoped, tag = 'scoped memory for tpu_custom_call.1']
    #allocation5 [shape = 'u8[8192]{0}', space=vmem, size = 0x2000, scoped, tag = 'input window, operand 1']
    #allocation6 [shape = 's32[2]{0}', space=sflag, size = 0x8, scoped, tag = 'scoped memory for tpu_custom_call.1']
    #allocation7 [shape = 'u8[16384]{0}', space=vmem, size = 0x4000, scoped, tag = 'input window, operand 2, single buffered']
    #allocation8 [shape = 'u8[16384]{0}', space=vmem, size = 0x4000, scoped, tag = 'input window, operand 3, single buffered']
    #allocation9 [shape = 's32[1]{0}', space=sflag, size = 0x4, scoped, tag = 'scoped memory for tpu_custom_call.1']
    #allocation10 [shape = 'u8[8192]{0}', space=vmem, size = 0x2000, scoped, tag = 'output window, operand 0']
    #allocation11 [shape = 'u8[8192]{0}', space=vmem, size = 0x2000, scoped, tag = 'output window, operand 1']
    #allocation12 [shape = 's32[2]{0}', space=sflag, size = 0x8, scoped, tag = 'scoped memory for tpu_custom_call.1']
    %13 = vsyncpa [#allocation3], 0
    %s14 = scalar_lea.sflag [#allocation3], 1
    %15 = vsyncpa %s14, 0
    %16 = vsyncpa [#allocation6], 0
    %s17 = scalar_lea.sflag [#allocation6], 1
    %18 = vsyncpa %s17, 0
    %19 = vsyncpa [#allocation9], 0
    %20 = vsyncpa [#allocation4], 0
    %s21 = scalar_lea.sflag [#allocation4], 1
    %22 = vsyncpa %s21, 0
    %23 = vsyncpa [#allocation12], 0
    %s24 = scalar_lea.sflag [#allocation12], 1
    %25 = vsyncpa %s24, 0
    loop: start=0, step=1, limit=4
    $region2: #{tpu_custom_call.1} parent=1 // loop_pre_header
      _
    $region3: #{tpu_custom_call.1} parent=1 // loop_header
      %s27 = sphi 0, %s31
      %p28 = scmp.ge.s32.totalorder %s27, 4
      %s37 = sphi 0, %s39
      %s40 = sphi 0, %s37
      %s41 = sphi 0, %s40
      %s57 = sphi 0, %s41
      %s63 = sphi 0, %s65
      %s66 = sphi 0, %s63
      %s67 = sphi 0, %s66
      %s83 = sphi 0, %s67
      %s87 = sphi 0, %s87
      %s89 = sphi 0, %s87
      %s90 = sphi 0, %s89
      %s104 = sphi 0, %s90
      %s108 = sphi 0, %s108
      %s110 = sphi 0, %s108
      %s111 = sphi 0, %s110
      %s125 = sphi 0, %s111
      %s129 = sphi 0, %s129
      %s131 = sphi 0, %s129
      %s132 = sphi 0, %s131
      %s146 = sphi 0, %s132
      %s150 = sphi 0, %s150
      %s152 = sphi 0, %s150
      %s153 = sphi 0, %s152
      %s167 = sphi 0, %s153
      %s173 = sphi 0, %s175
      %s176 = sphi 0, %s173
      %s177 = sphi 0, %s176
      %s193 = sphi 0, %s177
      %s199 = sphi 0, %s201
      %s202 = sphi 0, %s199
      %s203 = sphi 0, %s202
      %s219 = sphi 0, %s203
    $region4: #{tpu_custom_call.1} parent=1 // loop_header_branch
      %30 = sbr.rel (%p28) target = $region8
    $region5: #{tpu_custom_call.1} parent=1 // loop_body
      %s32 = ssub.s32 %s27, 1
      %s33 = ssub.s32 %s27, 2
      %s34 = sadd.s32 %s27, 1
      %s35 = ssub.s32 %s27, %s34
      %p36 = scmp.eq.s32.totalorder %s35, 0
      %s38 = sadd.s32 %s37, 1
      %s39 = scalar_select %p36, %s37, %s38
      %p42 = pneg %p36
      %p43 = scmp.eq.s32.totalorder %s27, 1
      %p44 = por %p42, %p43
      %p45 = scmp.ne.s32.totalorder %s37, %s40
      %p46 = scmp.eq.s32.totalorder %s27, 0
      %p47 = por %p45, %p46
      %p48 = scmp.ne.s32.totalorder %s37, %s40
      %p49 = scmp.eq.s32.totalorder %s32, 1
      %p50 = por %p48, %p49
      %p51 = scmp.ne.s32.totalorder %s40, %s41
      %p52 = scmp.eq.s32.totalorder %s32, 0
      %p53 = por %p51, %p52
      %p54 = scmp.ne.s32.totalorder %s40, %s41
      %p55 = scmp.eq.s32.totalorder %s33, 1
      %p56 = por %p54, %p55
      %p58 = scmp.ne.s32.totalorder %s41, %s57
      %p59 = scmp.eq.s32.totalorder %s33, 0
      %p60 = por %p58, %p59
      %s61 = ssub.s32 %s27, %s34
      %p62 = scmp.eq.s32.totalorder %s61, 0
      %s64 = sadd.s32 %s63, 1
      %s65 = scalar_select %p62, %s63, %s64
      %p68 = pneg %p62
      %p69 = scmp.eq.s32.totalorder %s27, 1
      %p70 = por %p68, %p69
      %p71 = scmp.ne.s32.totalorder %s63, %s66
      %p72 = scmp.eq.s32.totalorder %s27, 0
      %p73 = por %p71, %p72
      %p74 = scmp.ne.s32.totalorder %s63, %s66
      %p75 = scmp.eq.s32.totalorder %s32, 1
      %p76 = por %p74, %p75
      %p77 = scmp.ne.s32.totalorder %s66, %s67
      %p78 = scmp.eq.s32.totalorder %s32, 0
      %p79 = por %p77, %p78
      %p80 = scmp.ne.s32.totalorder %s66, %s67
      %p81 = scmp.eq.s32.totalorder %s33, 1
      %p82 = por %p80, %p81
      %p84 = scmp.ne.s32.totalorder %s67, %s83
      %p85 = scmp.eq.s32.totalorder %s33, 0
      %p86 = por %p84, %p85
      %s88 = sadd.s32 %s87, 1
      %p91 = scmp.eq.s32.totalorder %s27, 1
      %p92 = scmp.ne.s32.totalorder %s87, %s89
      %p93 = scmp.eq.s32.totalorder %s27, 0
      %p94 = por %p92, %p93
      %p95 = scmp.ne.s32.totalorder %s87, %s89
      %p96 = scmp.eq.s32.totalorder %s32, 1
      %p97 = por %p95, %p96
      %p98 = scmp.ne.s32.totalorder %s89, %s90
      %p99 = scmp.eq.s32.totalorder %s32, 0
      %p100 = por %p98, %p99
      %p101 = scmp.ne.s32.totalorder %s89, %s90
      %p102 = scmp.eq.s32.totalorder %s33, 1
      %p103 = por %p101, %p102
      %p105 = scmp.ne.s32.totalorder %s90, %s104
      %p106 = scmp.eq.s32.totalorder %s33, 0
      %p107 = por %p105, %p106
      %s109 = sadd.s32 %s108, 1
      %p112 = scmp.eq.s32.totalorder %s27, 1
      %p113 = scmp.ne.s32.totalorder %s108, %s110
      %p114 = scmp.eq.s32.totalorder %s27, 0
      %p115 = por %p113, %p114
      %p116 = scmp.ne.s32.totalorder %s108, %s110
      %p117 = scmp.eq.s32.totalorder %s32, 1
      %p118 = por %p116, %p117
      %p119 = scmp.ne.s32.totalorder %s110, %s111
      %p120 = scmp.eq.s32.totalorder %s32, 0
      %p121 = por %p119, %p120
      %p122 = scmp.ne.s32.totalorder %s110, %s111
      %p123 = scmp.eq.s32.totalorder %s33, 1
      %p124 = por %p122, %p123
      %p126 = scmp.ne.s32.totalorder %s111, %s125
      %p127 = scmp.eq.s32.totalorder %s33, 0
      %p128 = por %p126, %p127
      %s130 = sadd.s32 %s129, 1
      %p133 = scmp.eq.s32.totalorder %s27, 1
      %p134 = scmp.ne.s32.totalorder %s129, %s131
      %p135 = scmp.eq.s32.totalorder %s27, 0
      %p136 = por %p134, %p135
      %p137 = scmp.ne.s32.totalorder %s129, %s131
      %p138 = scmp.eq.s32.totalorder %s32, 1
      %p139 = por %p137, %p138
      %p140 = scmp.ne.s32.totalorder %s131, %s132
      %p141 = scmp.eq.s32.totalorder %s32, 0
      %p142 = por %p140, %p141
      %p143 = scmp.ne.s32.totalorder %s131, %s132
      %p144 = scmp.eq.s32.totalorder %s33, 1
      %p145 = por %p143, %p144
      %p147 = scmp.ne.s32.totalorder %s132, %s146
      %p148 = scmp.eq.s32.totalorder %s33, 0
      %p149 = por %p147, %p148
      %s151 = sadd.s32 %s150, 1
      %p154 = scmp.eq.s32.totalorder %s27, 1
      %p155 = scmp.ne.s32.totalorder %s150, %s152
      %p156 = scmp.eq.s32.totalorder %s27, 0
      %p157 = por %p155, %p156
      %p158 = scmp.ne.s32.totalorder %s150, %s152
      %p159 = scmp.eq.s32.totalorder %s32, 1
      %p160 = por %p158, %p159
      %p161 = scmp.ne.s32.totalorder %s152, %s153
      %p162 = scmp.eq.s32.totalorder %s32, 0
      %p163 = por %p161, %p162
      %p164 = scmp.ne.s32.totalorder %s152, %s153
      %p165 = scmp.eq.s32.totalorder %s33, 1
      %p166 = por %p164, %p165
      %p168 = scmp.ne.s32.totalorder %s153, %s167
      %p169 = scmp.eq.s32.totalorder %s33, 0
      %p170 = por %p168, %p169
      %s171 = ssub.s32 %s27, %s34
      %p172 = scmp.eq.s32.totalorder %s171, 0
      %s174 = sadd.s32 %s173, 1
      %s175 = scalar_select %p172, %s173, %s174
      %p178 = pneg %p172
      %p179 = scmp.eq.s32.totalorder %s27, 1
      %p180 = por %p178, %p179
      %p181 = scmp.ne.s32.totalorder %s173, %s176
      %p182 = scmp.eq.s32.totalorder %s27, 0
      %p183 = por %p181, %p182
      %p184 = scmp.ne.s32.totalorder %s173, %s176
      %p185 = scmp.eq.s32.totalorder %s32, 1
      %p186 = por %p184, %p185
      %p187 = scmp.ne.s32.totalorder %s176, %s177
      %p188 = scmp.eq.s32.totalorder %s32, 0
      %p189 = por %p187, %p188
      %p190 = scmp.ne.s32.totalorder %s176, %s177
      %p191 = scmp.eq.s32.totalorder %s33, 1
      %p192 = por %p190, %p191
      %p194 = scmp.ne.s32.totalorder %s177, %s193
      %p195 = scmp.eq.s32.totalorder %s33, 0
      %p196 = por %p194, %p195
      %s197 = ssub.s32 %s27, %s34
      %p198 = scmp.eq.s32.totalorder %s197, 0
      %s200 = sadd.s32 %s199, 1
      %s201 = scalar_select %p198, %s199, %s200
      %p204 = pneg %p198
      %p205 = scmp.eq.s32.totalorder %s27, 1
      %p206 = por %p204, %p205
      %p207 = scmp.ne.s32.totalorder %s199, %s202
      %p208 = scmp.eq.s32.totalorder %s27, 0
      %p209 = por %p207, %p208
      %p210 = scmp.ne.s32.totalorder %s199, %s202
      %p211 = scmp.eq.s32.totalorder %s32, 1
      %p212 = por %p210, %p211
      %p213 = scmp.ne.s32.totalorder %s202, %s203
      %p214 = scmp.eq.s32.totalorder %s32, 0
      %p215 = por %p213, %p214
      %p216 = scmp.ne.s32.totalorder %s202, %s203
      %p217 = scmp.eq.s32.totalorder %s33, 1
      %p218 = por %p216, %p217
      %p220 = scmp.ne.s32.totalorder %s203, %s219
      %p221 = scmp.eq.s32.totalorder %s33, 0
      %p222 = por %p220, %p221
      %p223 = scmp.le.s32.totalorder 1, %s27
      %p224 = scmp.lt.s32.totalorder %s27, 3
      %p225 = pnand %p223, %p224
      %p226 = pneg %p225
      // Predicated region
      $region9: #{tpu_custom_call.1} parent=5 // pred_check
        _
      $region10: #{tpu_custom_call.1} parent=5 // pred_check_branch
        %228 = sbr.rel (%p225) target = $region12
      $region11: #{tpu_custom_call.1} parent=5 // pred_region
        %s229 = ssub.s32 %s27, 1
        // Predicated region
        $region13: #{tpu_custom_call.1} parent=11 // pred_check
          %p230 = pneg %p100
        $region14: #{tpu_custom_call.1} parent=11 // pred_check_branch
          %232 = sbr.rel (%p230) target = $region16
        $region15: #{tpu_custom_call.1} parent=11 // pred_region
          %s234 = ssub.s32 512, 512
          %235 = vsyncadd [#allocation6], %s234
          %s236 = sshll.u32 [#allocation7], 4
          %s237 = int_to_ptr.vmem [resolvable:$true] %s236
          %242 = dma.hbm_to_vmem [thread:$0]  %s2, 512, %s237, [#allocation6], 128, 128, 8
        $region16: #{tpu_custom_call.1} parent=11 // pred_fallthru
          _
        // Predicated region
        $region17: #{tpu_custom_call.1} parent=11 // pred_check
          %p243 = pneg %p121
        $region18: #{tpu_custom_call.1} parent=11 // pred_check_branch
          %245 = sbr.rel (%p243) target = $region20
        $region19: #{tpu_custom_call.1} parent=11 // pred_region
          %s247 = ssub.s32 512, 512
          %248 = vsyncadd [#allocation9], %s247
          %s249 = sshll.u32 [#allocation8], 4
          %s250 = int_to_ptr.vmem [resolvable:$true] %s249
          %255 = dma.hbm_to_vmem [thread:$0]  %s3, 512, %s250, [#allocation9], 128, 128, 8
        $region20: #{tpu_custom_call.1} parent=11 // pred_fallthru
          _
        // Predicated region
        $region21: #{tpu_custom_call.1} parent=11 // pred_check
          %p256 = pneg %p142
        $region22: #{tpu_custom_call.1} parent=11 // pred_check_branch
          %258 = sbr.rel (%p256) target = $region24
        $region23: #{tpu_custom_call.1} parent=11 // pred_region
          _
        $region24: #{tpu_custom_call.1} parent=11 // pred_fallthru
          _
        // Predicated region
        $region25: #{tpu_custom_call.1} parent=11 // pred_check
          %p259 = pneg %p163
        $region26: #{tpu_custom_call.1} parent=11 // pred_check_branch
          %261 = sbr.rel (%p259) target = $region28
        $region27: #{tpu_custom_call.1} parent=11 // pred_region
          _
        $region28: #{tpu_custom_call.1} parent=11 // pred_fallthru
          _
      $region12: #{tpu_custom_call.1} parent=5 // pred_fallthru
        _
      %p262 = scmp.lt.s32.totalorder %s27, 2
      // Predicated region
      $region29: #{tpu_custom_call.1} parent=5 // pred_check
        %p263 = pneg %p262
      $region30: #{tpu_custom_call.1} parent=5 // pred_check_branch
        %265 = sbr.rel (%p263) target = $region32
      $region31: #{tpu_custom_call.1} parent=5 // pred_region
        // Predicated region
        $region33: #{tpu_custom_call.1} parent=31 // pred_check
          %p266 = pneg %p47
        $region34: #{tpu_custom_call.1} parent=31 // pred_check_branch
          %268 = sbr.rel (%p266) target = $region36
        $region35: #{tpu_custom_call.1} parent=31 // pred_region
          %s269 = sand.u32 %s37, 1
          %s270 = scalar_lea.sflag [#allocation3], %s269
          %s271 = sand.u32 %s37, 1
          %s272 = smul.addr %s271, 128
          %s273 = scalar_lea.vmem [#allocation2], %s272
          %s274 = smul.u32 8, %s27
          %s276 = ssub.s32 2048, 2048
          %277 = vsyncadd %s270, %s276
          %s278 = smul.addr %s274, 2
          %s279 = smul.addr %s278, 128
          %s280 = scalar_lea.hbm %s0, %s279
          %s281 = sshll.u32 %s273, 4
          %s282 = int_to_ptr.vmem [resolvable:$true] %s281
          %287 = dma.hbm_to_vmem [thread:$0]  %s280, 2048, %s282, %s270, 128, 128, 8
        $region36: #{tpu_custom_call.1} parent=31 // pred_fallthru
          _
        // Predicated region
        $region37: #{tpu_custom_call.1} parent=31 // pred_check
          %p288 = pneg %p73
        $region38: #{tpu_custom_call.1} parent=31 // pred_check_branch
          %290 = sbr.rel (%p288) target = $region40
        $region39: #{tpu_custom_call.1} parent=31 // pred_region
          %s291 = sand.u32 %s27, 1
          %s292 = scalar_lea.sflag [#allocation6], %s291
          %s293 = sand.u32 %s63, 1
          %s294 = smul.addr %s293, 8
          %s295 = scalar_lea.vmem [#allocation5], %s294
          %s297 = ssub.s32 128, 128
          %298 = vsyncadd %s292, %s297
          %s299 = smul.addr %s27, 128
          %s300 = scalar_lea.hbm %s1, %s299
          %s302 = sshll.u32 %s295, 4
          %s303 = int_to_ptr.vmem [resolvable:$true] %s302
          %305 = dma.hbm_to_vmem [thread:$0]  %s300, 128, %s303, %s292
        $region40: #{tpu_custom_call.1} parent=31 // pred_fallthru
          _
      $region32: #{tpu_custom_call.1} parent=5 // pred_fallthru
        _
      %p306 = scmp.le.s32.totalorder 1, %s27
      %p307 = scmp.lt.s32.totalorder %s27, 3
      %p308 = pnand %p306, %p307
      %p309 = pneg %p308
      // Predicated region
      $region41: #{tpu_custom_call.1} parent=5 // pred_check
        _
      $region42: #{tpu_custom_call.1} parent=5 // pred_check_branch
        %311 = sbr.rel (%p308) target = $region44
      $region43: #{tpu_custom_call.1} parent=5 // pred_region
        %s312 = ssub.s32 %s27, 1
        %s313 = sand.u32 %s40, 1
        %s314 = scalar_lea.sflag [#allocation3], %s313
        %s315 = sand.u32 %s40, 1
        %s316 = smul.addr %s315, 128
        %s317 = scalar_lea.vmem [#allocation2], %s316
        // Predicated region
        $region45: #{tpu_custom_call.1} parent=43 // pred_check
          %p318 = pneg %p53
        $region46: #{tpu_custom_call.1} parent=43 // pred_check_branch
          %320 = sbr.rel (%p318) target = $region48
        $region47: #{tpu_custom_call.1} parent=43 // pred_region
          %321 = dma.done %s314, 2048
        $region48: #{tpu_custom_call.1} parent=43 // pred_fallthru
          _
        %s322 = sand.u32 %s32, 1
        %s323 = scalar_lea.sflag [#allocation6], %s322
        %s324 = sand.u32 %s66, 1
        %s325 = smul.addr %s324, 8
        %s326 = scalar_lea.vmem [#allocation5], %s325
        // Predicated region
        $region49: #{tpu_custom_call.1} parent=43 // pred_check
          %p327 = pneg %p79
        $region50: #{tpu_custom_call.1} parent=43 // pred_check_branch
          %329 = sbr.rel (%p327) target = $region52
        $region51: #{tpu_custom_call.1} parent=43 // pred_region
          %330 = dma.done %s323, 128
        $region52: #{tpu_custom_call.1} parent=43 // pred_fallthru
          _
        // Predicated region
        $region53: #{tpu_custom_call.1} parent=43 // pred_check
          %p331 = pneg %p100
        $region54: #{tpu_custom_call.1} parent=43 // pred_check_branch
          %333 = sbr.rel (%p331) target = $region56
        $region55: #{tpu_custom_call.1} parent=43 // pred_region
          %334 = dma.done [#allocation6], 512
        $region56: #{tpu_custom_call.1} parent=43 // pred_fallthru
          _
        // Predicated region
        $region57: #{tpu_custom_call.1} parent=43 // pred_check
          %p335 = pneg %p121
        $region58: #{tpu_custom_call.1} parent=43 // pred_check_branch
          %337 = sbr.rel (%p335) target = $region60
        $region59: #{tpu_custom_call.1} parent=43 // pred_region
          %338 = dma.done [#allocation9], 512
        $region60: #{tpu_custom_call.1} parent=43 // pred_fallthru
          _
        %s339 = sand.u32 %s40, 1
        %s340 = scalar_lea.sflag [#allocation3], %s339
        %s341 = sand.u32 %s40, 1
        %s342 = smul.addr %s341, 128
        %s343 = scalar_lea.vmem [#allocation2], %s342
        %p344 = pneg %p53
        %p345 = pneg %p50
        %s346 = sand.u32 %s32, 1
        %s347 = scalar_lea.sflag [#allocation6], %s346
        %s348 = sand.u32 %s66, 1
        %s349 = smul.addr %s348, 8
        %s350 = scalar_lea.vmem [#allocation5], %s349
        %p351 = pneg %p79
        %p352 = pneg %p76
        %p353 = pneg %p100
        %p354 = pneg %p97
        %p355 = pneg %p121
        %p356 = pneg %p118
        %p357 = pneg %p142
        %p358 = pneg %p139
        %p359 = pneg %p163
        %p360 = pneg %p160
        %p361 = pneg %p189
        %p362 = pneg %p186
        %s363 = sand.u32 %s176, 1
        %s364 = scalar_lea.sflag [#allocation4], %s363
        %s365 = sand.u32 %s176, 1
        %s366 = smul.addr %s365, 8
        %s367 = scalar_lea.vmem [#allocation10], %s366
        %p368 = pneg %p215
        %p369 = pneg %p212
        %s370 = sand.u32 %s202, 1
        %s371 = scalar_lea.sflag [#allocation12], %s370
        %s372 = sand.u32 %s202, 1
        %s373 = smul.addr %s372, 8
        %s374 = scalar_lea.vmem [#allocation11], %s373
        %s375 = smul.u32 8, %s32
        %v376 = vld [vmem:[%s317] sm:$0xff]
        %v377 = vld [vmem:[%s317 + $0x8] sm:$0xff]
        %v378 = vld [vmem:[%s317 + $0x10] sm:$0xff]
        %v379 = vld [vmem:[%s317 + $0x18] sm:$0xff]
        %v380 = vld [vmem:[%s317 + $0x20] sm:$0xff]
        %v381 = vld [vmem:[%s317 + $0x28] sm:$0xff]
        %v382 = vld [vmem:[%s317 + $0x30] sm:$0xff]
        %v383 = vld [vmem:[%s317 + $0x38] sm:$0xff]
        %v384 = vld [vmem:[%s317 + $0x40] sm:$0xff]
        %v385 = vld [vmem:[%s317 + $0x48] sm:$0xff]
        %v386 = vld [vmem:[%s317 + $0x50] sm:$0xff]
        %v387 = vld [vmem:[%s317 + $0x58] sm:$0xff]
        %v388 = vld [vmem:[%s317 + $0x60] sm:$0xff]
        %v389 = vld [vmem:[%s317 + $0x68] sm:$0xff]
        %v390 = vld [vmem:[%s317 + $0x70] sm:$0xff]
        %v391 = vld [vmem:[%s317 + $0x78] sm:$0xff]
        %v392 = vld [vmem:[%s326] sm:$0xff]
        %v393 = vld [vmem:[#allocation8] sm:$0xff]
        %v394 = vld [vmem:[#allocation8 + $0x8] sm:$0xff]
        %v395 = vld [vmem:[#allocation8 + $0x10] sm:$0xff]
        %v396 = vld [vmem:[#allocation8 + $0x18] sm:$0xff]
        %v397 = vld [vmem:[%s5] sm:$0x1]
        %v399 = vlaneseq
        %v400 = vshrl.u32 %v399, 7
        %v401 = vsub.s32 0, %v400
        %v402 = vrot.slane %v397, %v401
        %vm404 = vcmask 261120
        %v406 = vsel %vm404, %v392, 0
        %408 = vmatprep.subr.mxu0 0.0
        %409 = vmatpush1.msra.mxu0 %v393
        %410 = vmatprep.subr.mxu0 0.0
        %411 = vmatpush1.msra.mxu0 %v394
        %412 = vmatprep.subr.mxu0 0.0
        %413 = vmatpush1.msra.mxu0 %v395
        %414 = vmatprep.subr.mxu0 0.0
        %415 = vmatpush1.msra.mxu0 %v396
        %416 = vmatprep.subr.mxu0 0.0
        %417 = vmatpush1.msra.mxu0 0.0
        %418 = vmatprep.subr.mxu0 0.0
        %419 = vmatpush1.msra.mxu0 0.0
        %420 = vmatprep.subr.mxu0 0.0
        %421 = vmatpush1.msra.mxu0 0.0
        %422 = vmatprep.subr.mxu0 0.0
        %423 = vmatpush1.msra.mxu0 0.0
        %424 = vmatprep.subr.mxu0 0.0
        %425 = vmatpush1.msra.mxu0 0.0
        %426 = vmatprep.subr.mxu0 0.0
        %427 = vmatpush1.msra.mxu0 0.0
        %428 = vmatprep.subr.mxu0 0.0
        %429 = vmatpush1.msra.mxu0 0.0
        %430 = vmatprep.subr.mxu0 0.0
        %431 = vmatpush1.msra.mxu0 0.0
        %432 = vmatprep.subr.mxu0 0.0
        %433 = vmatpush1.msra.mxu0 0.0
        %434 = vmatprep.subr.mxu0 0.0
        %435 = vmatpush1.msra.mxu0 0.0
        %436 = vmatprep.subr.mxu0 0.0
        %437 = vmatpush1.msra.mxu0 0.0
        %438 = vmatprep.subr.mxu0 0.0
        %439 = vmatpush1.msra.mxu0 0.0
        %440 = vmatprep.subr.mxu0 0.0
        %441 = vmatpush1.msra.mxu0 0.0
        %442 = vmatprep.subr.mxu0 0.0
        %443 = vmatpush1.msra.mxu0 0.0
        %444 = vmatprep.subr.mxu0 0.0
        %445 = vmatpush1.msra.mxu0 0.0
        %446 = vmatprep.subr.mxu0 0.0
        %447 = vmatpush1.msra.mxu0 0.0
        %448 = vmatprep.subr.mxu0 0.0
        %449 = vmatpush1.msra.mxu0 0.0
        %450 = vmatprep.subr.mxu0 0.0
        %451 = vmatpush1.msra.mxu0 0.0
        %452 = vmatprep.subr.mxu0 0.0
        %453 = vmatpush1.msra.mxu0 0.0
        %454 = vmatprep.subr.mxu0 0.0
        %455 = vmatpush1.msra.mxu0 0.0
        %456 = vmatprep.subr.mxu0 0.0
        %457 = vmatpush1.msra.mxu0 0.0
        %458 = vmatprep.subr.mxu0 0.0
        %459 = vmatpush1.msra.mxu0 0.0
        %460 = vmatprep.subr.mxu0 0.0
        %461 = vmatpush1.msra.mxu0 0.0
        %462 = vmatprep.subr.mxu0 0.0
        %463 = vmatpush1.msra.mxu0 0.0
        %464 = vmatprep.subr.mxu0 0.0
        %465 = vmatpush1.msra.mxu0 0.0
        %466 = vmatprep.subr.mxu0 0.0
        %467 = vmatpush1.msra.mxu0 0.0
        %468 = vmatprep.subr.mxu0 0.0
        %469 = vmatpush1.msra.mxu0 0.0
        %470 = vmatprep.subr.mxu0 0.0
        %471 = vmatpush1.msra.mxu0 0.0
        %472 = vmatprep.mubr.f32.mxu0 0.0
        %473 = vmatmul.mubr.f32.gmra.mrb[0].mxu0 %v406
        %v474 = vpop.f32.mrb[0].mxu0
        %v475 = vadd.f32 %v402, %v474
        %v476 = vpop.f32.mrb[0].mxu0
        %477 = vdwg.mxu0
        %v478 = vld [vmem:[%s4] sm:$0x1]
        %v479 = vld [vmem:[#allocation7] sm:$0xff]
        %v480 = vld [vmem:[#allocation7 + $0x8] sm:$0xff]
        %v481 = vld [vmem:[#allocation7 + $0x10] sm:$0xff]
        %v482 = vld [vmem:[#allocation7 + $0x18] sm:$0xff]
        %v484 = vsel %vm404, %v376, 0
        %v487 = vsel %vm404, %v377, 0
        %v490 = vsel %vm404, %v378, 0
        %v493 = vsel %vm404, %v379, 0
        %v496 = vsel %vm404, %v380, 0
        %v499 = vsel %vm404, %v381, 0
        %v502 = vsel %vm404, %v382, 0
        %v505 = vsel %vm404, %v383, 0
        %v508 = vsel %vm404, %v384, 0
        %v511 = vsel %vm404, %v385, 0
        %v514 = vsel %vm404, %v386, 0
        %v517 = vsel %vm404, %v387, 0
        %v520 = vsel %vm404, %v388, 0
        %v523 = vsel %vm404, %v389, 0
        %v526 = vsel %vm404, %v390, 0
        %v529 = vsel %vm404, %v391, 0
        %531 = vmatprep.subr.mxu0 0.0
        %532 = vmatpush1.msra.mxu0 %v479
        %533 = vmatprep.subr.mxu0 0.0
        %534 = vmatpush1.msra.mxu0 %v480
        %535 = vmatprep.subr.mxu0 0.0
        %536 = vmatpush1.msra.mxu0 %v481
        %537 = vmatprep.subr.mxu0 0.0
        %538 = vmatpush1.msra.mxu0 %v482
        %539 = vmatprep.subr.mxu0 0.0
        %540 = vmatpush1.msra.mxu0 0.0
        %541 = vmatprep.subr.mxu0 0.0
        %542 = vmatpush1.msra.mxu0 0.0
        %543 = vmatprep.subr.mxu0 0.0
        %544 = vmatpush1.msra.mxu0 0.0
        %545 = vmatprep.subr.mxu0 0.0
        %546 = vmatpush1.msra.mxu0 0.0
        %547 = vmatprep.subr.mxu0 0.0
        %548 = vmatpush1.msra.mxu0 0.0
        %549 = vmatprep.subr.mxu0 0.0
        %550 = vmatpush1.msra.mxu0 0.0
        %551 = vmatprep.subr.mxu0 0.0
        %552 = vmatpush1.msra.mxu0 0.0
        %553 = vmatprep.subr.mxu0 0.0
        %554 = vmatpush1.msra.mxu0 0.0
        %555 = vmatprep.subr.mxu0 0.0
        %556 = vmatpush1.msra.mxu0 0.0
        %557 = vmatprep.subr.mxu0 0.0
        %558 = vmatpush1.msra.mxu0 0.0
        %559 = vmatprep.subr.mxu0 0.0
        %560 = vmatpush1.msra.mxu0 0.0
        %561 = vmatprep.subr.mxu0 0.0
        %562 = vmatpush1.msra.mxu0 0.0
        %563 = vmatprep.subr.mxu0 0.0
        %564 = vmatpush1.msra.mxu0 0.0
        %565 = vmatprep.subr.mxu0 0.0
        %566 = vmatpush1.msra.mxu0 0.0
        %567 = vmatprep.subr.mxu0 0.0
        %568 = vmatpush1.msra.mxu0 0.0
        %569 = vmatprep.subr.mxu0 0.0
        %570 = vmatpush1.msra.mxu0 0.0
        %571 = vmatprep.subr.mxu0 0.0
        %572 = vmatpush1.msra.mxu0 0.0
        %573 = vmatprep.subr.mxu0 0.0
        %574 = vmatpush1.msra.mxu0 0.0
        %575 = vmatprep.subr.mxu0 0.0
        %576 = vmatpush1.msra.mxu0 0.0
        %577 = vmatprep.subr.mxu0 0.0
        %578 = vmatpush1.msra.mxu0 0.0
        %579 = vmatprep.subr.mxu0 0.0
        %580 = vmatpush1.msra.mxu0 0.0
        %581 = vmatprep.subr.mxu0 0.0
        %582 = vmatpush1.msra.mxu0 0.0
        %583 = vmatprep.subr.mxu0 0.0
        %584 = vmatpush1.msra.mxu0 0.0
        %585 = vmatprep.subr.mxu0 0.0
        %586 = vmatpush1.msra.mxu0 0.0
        %587 = vmatprep.subr.mxu0 0.0
        %588 = vmatpush1.msra.mxu0 0.0
        %589 = vmatprep.subr.mxu0 0.0
        %590 = vmatpush1.msra.mxu0 0.0
        %591 = vmatprep.subr.mxu0 0.0
        %592 = vmatpush1.msra.mxu0 0.0
        %593 = vmatprep.subr.mxu0 0.0
        %594 = vmatpush1.msra.mxu0 0.0
        %595 = vmatprep.mubr.f32.mxu0 0.0
        %596 = vmatmul.mubr.f32.gmra.mrb[0].mxu0 %v484
        %v597 = vpop.f32.mrb[0].mxu0
        %v598 = vadd.f32 0.0, %v597
        %v599 = vpop.f32.mrb[0].mxu0
        %600 = vmatprep.mubr.f32.mxu0 0.0
        %601 = vmatmul.mubr.f32.gmra.mrb[0].mxu0 %v487
        %v602 = vpop.f32.mrb[0].mxu0
        %v603 = vadd.f32 0.0, %v602
        %v604 = vpop.f32.mrb[0].mxu0
        %605 = vmatprep.mubr.f32.mxu0 0.0
        %606 = vmatmul.mubr.f32.gmra.mrb[0].mxu0 %v490
        %v607 = vpop.f32.mrb[0].mxu0
        %v608 = vadd.f32 0.0, %v607
        %v609 = vpop.f32.mrb[0].mxu0
        %610 = vmatprep.mubr.f32.mxu0 0.0
        %611 = vmatmul.mubr.f32.gmra.mrb[0].mxu0 %v493
        %v612 = vpop.f32.mrb[0].mxu0
        %v613 = vadd.f32 0.0, %v612
        %v614 = vpop.f32.mrb[0].mxu0
        %615 = vmatprep.mubr.f32.mxu0 0.0
        %616 = vmatmul.mubr.f32.gmra.mrb[0].mxu0 %v496
        %v617 = vpop.f32.mrb[0].mxu0
        %v618 = vadd.f32 0.0, %v617
        %v619 = vpop.f32.mrb[0].mxu0
        %620 = vmatprep.mubr.f32.mxu0 0.0
        %621 = vmatmul.mubr.f32.gmra.mrb[0].mxu0 %v499
        %v622 = vpop.f32.mrb[0].mxu0
        %v623 = vadd.f32 0.0, %v622
        %v624 = vpop.f32.mrb[0].mxu0
        %625 = vmatprep.mubr.f32.mxu0 0.0
        %626 = vmatmul.mubr.f32.gmra.mrb[0].mxu0 %v502
        %v627 = vpop.f32.mrb[0].mxu0
        %v628 = vadd.f32 0.0, %v627
        %v629 = vpop.f32.mrb[0].mxu0
        %630 = vmatprep.mubr.f32.mxu0 0.0
        %631 = vmatmul.mubr.f32.gmra.mrb[0].mxu0 %v505
        %v632 = vpop.f32.mrb[0].mxu0
        %v633 = vadd.f32 0.0, %v632
        %v634 = vpop.f32.mrb[0].mxu0
        %635 = vmatprep.mubr.f32.mxu0 0.0
        %636 = vmatmul.mubr.f32.gmra.mrb[0].mxu0 %v508
        %v637 = vpop.f32.mrb[0].mxu0
        %v638 = vadd.f32 0.0, %v637
        %v639 = vpop.f32.mrb[0].mxu0
        %640 = vmatprep.mubr.f32.mxu0 0.0
        %641 = vmatmul.mubr.f32.gmra.mrb[0].mxu0 %v511
        %v642 = vpop.f32.mrb[0].mxu0
        %v643 = vadd.f32 0.0, %v642
        %v644 = vpop.f32.mrb[0].mxu0
        %645 = vmatprep.mubr.f32.mxu0 0.0
        %646 = vmatmul.mubr.f32.gmra.mrb[0].mxu0 %v514
        %v647 = vpop.f32.mrb[0].mxu0
        %v648 = vadd.f32 0.0, %v647
        %v649 = vpop.f32.mrb[0].mxu0
        %650 = vmatprep.mubr.f32.mxu0 0.0
        %651 = vmatmul.mubr.f32.gmra.mrb[0].mxu0 %v517
        %v652 = vpop.f32.mrb[0].mxu0
        %v653 = vadd.f32 0.0, %v652
        %v654 = vpop.f32.mrb[0].mxu0
        %655 = vmatprep.mubr.f32.mxu0 0.0
        %656 = vmatmul.mubr.f32.gmra.mrb[0].mxu0 %v520
        %v657 = vpop.f32.mrb[0].mxu0
        %v658 = vadd.f32 0.0, %v657
        %v659 = vpop.f32.mrb[0].mxu0
        %660 = vmatprep.mubr.f32.mxu0 0.0
        %661 = vmatmul.mubr.f32.gmra.mrb[0].mxu0 %v523
        %v662 = vpop.f32.mrb[0].mxu0
        %v663 = vadd.f32 0.0, %v662
        %v664 = vpop.f32.mrb[0].mxu0
        %665 = vmatprep.mubr.f32.mxu0 0.0
        %666 = vmatmul.mubr.f32.gmra.mrb[0].mxu0 %v526
        %v667 = vpop.f32.mrb[0].mxu0
        %v668 = vadd.f32 0.0, %v667
        %v669 = vpop.f32.mrb[0].mxu0
        %670 = vmatprep.mubr.f32.mxu0 0.0
        %671 = vmatmul.mubr.f32.gmra.mrb[0].mxu0 %v529
        %v672 = vpop.f32.mrb[0].mxu0
        %v673 = vadd.f32 0.0, %v672
        %v674 = vpop.f32.mrb[0].mxu0
        %675 = vdwg.mxu0
        %v677 = vcombine.high %v475, %v475
        %v679 = vunpack.c.l.s4 1966171168
        %v680 = vunpack.c.0.s8 %v679
        %v681 = vlaneseq
        %v682 = vshrl.u32 %v681, 7
        %v683 = vsub.s32 %v680, %v682
        %v684 = vrot.slane %v475, %v683
        %v686 = vunpack.c.l.s4 1966171168
        %v687 = vunpack.c.0.s8 %v686
        %v688 = vlaneseq
        %v689 = vshrl.u32 %v688, 7
        %v690 = vsub.s32 %v687, %v689
        %v691 = vrot.slane %v677, %v690
        %v692 = vcombine.high %v684, %v684
        %v693 = vcombine.high %v691, %v691
        %v695 = vunpack.c.l.s4 1966171168
        %v696 = vunpack.c.0.s8 %v695
        %v697 = vlaneseq
        %v698 = vshrl.u32 %v697, 7
        %v699 = vsub.s32 %v696, %v698
        %v700 = vrot.slane %v684, %v699
        %v702 = vunpack.c.l.s4 1966171168
        %v703 = vunpack.c.0.s8 %v702
        %v704 = vlaneseq
        %v705 = vshrl.u32 %v704, 7
        %v706 = vsub.s32 %v703, %v705
        %v707 = vrot.slane %v691, %v706
        %v709 = vunpack.c.l.s4 1966171168
        %v710 = vunpack.c.0.s8 %v709
        %v711 = vlaneseq
        %v712 = vshrl.u32 %v711, 7
        %v713 = vsub.s32 %v710, %v712
        %v714 = vrot.slane %v692, %v713
        %v716 = vunpack.c.l.s4 1966171168
        %v717 = vunpack.c.0.s8 %v716
        %v718 = vlaneseq
        %v719 = vshrl.u32 %v718, 7
        %v720 = vsub.s32 %v717, %v719
        %v721 = vrot.slane %v693, %v720
        %v722 = vcombine.high %v700, %v700
        %v723 = vcombine.high %v707, %v707
        %v724 = vcombine.high %v714, %v714
        %v725 = vcombine.high %v721, %v721
        %v726 = vlaneseq
        %v727 = vshrl.u32 %v726, 7
        %v728 = vsub.s32 0, %v727
        %v729 = vrot.slane %v700, %v728
        %v730 = vlaneseq
        %v731 = vshrl.u32 %v730, 7
        %v732 = vsub.s32 0, %v731
        %v733 = vrot.slane %v714, %v732
        %v734 = vlaneseq
        %v735 = vshrl.u32 %v734, 7
        %v736 = vsub.s32 0, %v735
        %v737 = vrot.slane %v722, %v736
        %v738 = vlaneseq
        %v739 = vshrl.u32 %v738, 7
        %v740 = vsub.s32 0, %v739
        %v741 = vrot.slane %v724, %v740
        %v742 = vlaneseq
        %v743 = vshrl.u32 %v742, 7
        %v744 = vsub.s32 0, %v743
        %v745 = vrot.slane %v707, %v744
        %v746 = vlaneseq
        %v747 = vshrl.u32 %v746, 7
        %v748 = vsub.s32 0, %v747
        %v749 = vrot.slane %v721, %v748
        %v750 = vlaneseq
        %v751 = vshrl.u32 %v750, 7
        %v752 = vsub.s32 0, %v751
        %v753 = vrot.slane %v723, %v752
        %v754 = vlaneseq
        %v755 = vshrl.u32 %v754, 7
        %v756 = vsub.s32 0, %v755
        %v757 = vrot.slane %v725, %v756
        %v766 = vadd.f32 %v598, %v729
        %v767 = vadd.f32 %v603, %v729
        %v768 = vadd.f32 %v608, %v733
        %v769 = vadd.f32 %v613, %v733
        %v770 = vadd.f32 %v618, %v737
        %v771 = vadd.f32 %v623, %v737
        %v772 = vadd.f32 %v628, %v741
        %v773 = vadd.f32 %v633, %v741
        %v774 = vadd.f32 %v638, %v745
        %v775 = vadd.f32 %v643, %v745
        %v776 = vadd.f32 %v648, %v749
        %v777 = vadd.f32 %v653, %v749
        %v778 = vadd.f32 %v658, %v753
        %v779 = vadd.f32 %v663, %v753
        %v780 = vadd.f32 %v668, %v757
        %v781 = vadd.f32 %v673, %v757
        %v782 = vmax.f32 %v766, 0.0
        %v783 = vmax.f32 %v767, 0.0
        %v784 = vmax.f32 %v768, 0.0
        %v785 = vmax.f32 %v769, 0.0
        %v786 = vmax.f32 %v770, 0.0
        %v787 = vmax.f32 %v771, 0.0
        %v788 = vmax.f32 %v772, 0.0
        %v789 = vmax.f32 %v773, 0.0
        %v790 = vmax.f32 %v774, 0.0
        %v791 = vmax.f32 %v775, 0.0
        %v792 = vmax.f32 %v776, 0.0
        %v793 = vmax.f32 %v777, 0.0
        %v794 = vmax.f32 %v778, 0.0
        %v795 = vmax.f32 %v779, 0.0
        %v796 = vmax.f32 %v780, 0.0
        %v797 = vmax.f32 %v781, 0.0
        %v799 = vlaneseq
        %v800 = vshrl.u32 %v799, 7
        %v801 = vsub.s32 0, %v800
        %v802 = vrot.slane %v478, %v801
        %v804 = vmul.f32 %v782, %v802
        %v805 = vmul.f32 %v783, %v802
        %v806 = vmul.f32 %v784, %v802
        %v807 = vmul.f32 %v785, %v802
        %v808 = vmul.f32 %v786, %v802
        %v809 = vmul.f32 %v787, %v802
        %v810 = vmul.f32 %v788, %v802
        %v811 = vmul.f32 %v789, %v802
        %v812 = vmul.f32 %v790, %v802
        %v813 = vmul.f32 %v791, %v802
        %v814 = vmul.f32 %v792, %v802
        %v815 = vmul.f32 %v793, %v802
        %v816 = vmul.f32 %v794, %v802
        %v817 = vmul.f32 %v795, %v802
        %v818 = vmul.f32 %v796, %v802
        %v819 = vmul.f32 %v797, %v802
        %v820 = vsel %vm404, %v804, 0.0
        %821 = vadd.xlane.f32.xlu0 %v820
        %v822 = vpop.xlane.xlu0 %821
        %v823 = vsel %vm404, %v805, 0.0
        %824 = vadd.xlane.f32.xlu0 %v823
        %v825 = vpop.xlane.xlu0 %824
        %v826 = vsel %vm404, %v806, 0.0
        %827 = vadd.xlane.f32.xlu0 %v826
        %v828 = vpop.xlane.xlu0 %827
        %v829 = vsel %vm404, %v807, 0.0
        %830 = vadd.xlane.f32.xlu0 %v829
        %v831 = vpop.xlane.xlu0 %830
        %v832 = vsel %vm404, %v808, 0.0
        %833 = vadd.xlane.f32.xlu0 %v832
        %v834 = vpop.xlane.xlu0 %833
        %v835 = vsel %vm404, %v809, 0.0
        %836 = vadd.xlane.f32.xlu0 %v835
        %v837 = vpop.xlane.xlu0 %836
        %v838 = vsel %vm404, %v810, 0.0
        %839 = vadd.xlane.f32.xlu0 %v838
        %v840 = vpop.xlane.xlu0 %839
        %v841 = vsel %vm404, %v811, 0.0
        %842 = vadd.xlane.f32.xlu0 %v841
        %v843 = vpop.xlane.xlu0 %842
        %v844 = vsel %vm404, %v812, 0.0
        %845 = vadd.xlane.f32.xlu0 %v844
        %v846 = vpop.xlane.xlu0 %845
        %v847 = vsel %vm404, %v813, 0.0
        %848 = vadd.xlane.f32.xlu0 %v847
        %v849 = vpop.xlane.xlu0 %848
        %v850 = vsel %vm404, %v814, 0.0
        %851 = vadd.xlane.f32.xlu0 %v850
        %v852 = vpop.xlane.xlu0 %851
        %v853 = vsel %vm404, %v815, 0.0
        %854 = vadd.xlane.f32.xlu0 %v853
        %v855 = vpop.xlane.xlu0 %854
        %v856 = vsel %vm404, %v816, 0.0
        %857 = vadd.xlane.f32.xlu0 %v856
        %v858 = vpop.xlane.xlu0 %857
        %v859 = vsel %vm404, %v817, 0.0
        %860 = vadd.xlane.f32.xlu0 %v859
        %v861 = vpop.xlane.xlu0 %860
        %v862 = vsel %vm404, %v818, 0.0
        %863 = vadd.xlane.f32.xlu0 %v862
        %v864 = vpop.xlane.xlu0 %863
        %v865 = vsel %vm404, %v819, 0.0
        %866 = vadd.xlane.f32.xlu0 %v865
        %v867 = vpop.xlane.xlu0 %866
        %v884 = vlaneseq
        %v885 = vand.u32 %v884, 127
        %v886 = vlaneseq
        %v887 = vshrl.u32 %v886, 7
        %v888 = vsub.s32 %v885, %v887
        %v889 = vrot.slane %v822, %v888
        %v890 = vadd.s32 %v885, 4294967288
        %v891 = vlaneseq
        %v892 = vshrl.u32 %v891, 7
        %v893 = vsub.s32 %v890, %v892
        %v894 = vrot.slane %v825, %v893
        %vm895 = vcmask 130112
        %v896 = vsel %vm895, %v894, %v889
        %v897 = vlaneseq
        %v898 = vshrl.u32 %v897, 7
        %v899 = vsub.s32 %v885, %v898
        %v900 = vrot.slane %v828, %v899
        %v901 = vlaneseq
        %v902 = vshrl.u32 %v901, 7
        %v903 = vsub.s32 %v890, %v902
        %v904 = vrot.slane %v831, %v903
        %v905 = vsel %vm895, %v904, %v900
        %v906 = vlaneseq
        %v907 = vshrl.u32 %v906, 7
        %v908 = vsub.s32 %v885, %v907
        %v909 = vrot.slane %v834, %v908
        %v910 = vlaneseq
        %v911 = vshrl.u32 %v910, 7
        %v912 = vsub.s32 %v890, %v911
        %v913 = vrot.slane %v837, %v912
        %v914 = vsel %vm895, %v913, %v909
        %v915 = vlaneseq
        %v916 = vshrl.u32 %v915, 7
        %v917 = vsub.s32 %v885, %v916
        %v918 = vrot.slane %v840, %v917
        %v919 = vlaneseq
        %v920 = vshrl.u32 %v919, 7
        %v921 = vsub.s32 %v890, %v920
        %v922 = vrot.slane %v843, %v921
        %v923 = vsel %vm895, %v922, %v918
        %v924 = vlaneseq
        %v925 = vshrl.u32 %v924, 7
        %v926 = vsub.s32 %v885, %v925
        %v927 = vrot.slane %v846, %v926
        %v928 = vlaneseq
        %v929 = vshrl.u32 %v928, 7
        %v930 = vsub.s32 %v890, %v929
        %v931 = vrot.slane %v849, %v930
        %v932 = vsel %vm895, %v931, %v927
        %v933 = vlaneseq
        %v934 = vshrl.u32 %v933, 7
        %v935 = vsub.s32 %v885, %v934
        %v936 = vrot.slane %v852, %v935
        %v937 = vlaneseq
        %v938 = vshrl.u32 %v937, 7
        %v939 = vsub.s32 %v890, %v938
        %v940 = vrot.slane %v855, %v939
        %v941 = vsel %vm895, %v940, %v936
        %v942 = vlaneseq
        %v943 = vshrl.u32 %v942, 7
        %v944 = vsub.s32 %v885, %v943
        %v945 = vrot.slane %v858, %v944
        %v946 = vlaneseq
        %v947 = vshrl.u32 %v946, 7
        %v948 = vsub.s32 %v890, %v947
        %v949 = vrot.slane %v861, %v948
        %v950 = vsel %vm895, %v949, %v945
        %v951 = vlaneseq
        %v952 = vshrl.u32 %v951, 7
        %v953 = vsub.s32 %v885, %v952
        %v954 = vrot.slane %v864, %v953
        %v955 = vlaneseq
        %v956 = vshrl.u32 %v955, 7
        %v957 = vsub.s32 %v890, %v956
        %v958 = vrot.slane %v867, %v957
        %v959 = vsel %vm895, %v958, %v954
        %vm960 = vcmask 1041409
        %v961 = vsel %vm960, %v905, %v896
        %vm962 = vcmask 1042434
        %v963 = vsel %vm962, %v914, %v961
        %vm964 = vcmask 1043459
        %v965 = vsel %vm964, %v923, %v963
        %vm966 = vcmask 1044484
        %v967 = vsel %vm966, %v932, %v965
        %vm968 = vcmask 1045509
        %v969 = vsel %vm968, %v941, %v967
        %vm970 = vcmask 1046534
        %v971 = vsel %vm970, %v950, %v969
        %vm972 = vcmask 1047559
        %v973 = vsel %vm972, %v959, %v971
        %vm975 = vcmask 130048
        %v976 = vsel %vm975, %v973, -inf
        %977 = vmax.xlane.f32.xlu0 %v976
        %v978 = vpop.xlane.xlu0 %977
        %v980 = vlaneseq
        %v981 = vshrl.u32 %v980, 7
        %v982 = vsub.s32 0, %v981
        %v983 = vrot.slane %v978, %v982
        %v984 = vlaneseq
        %v985 = vshrl.u32 %v984, 7
        %v986 = vsub.s32 1, %v985
        %v987 = vrot.slane %v978, %v986
        %v988 = vlaneseq
        %v989 = vshrl.u32 %v988, 7
        %v990 = vsub.s32 2, %v989
        %v991 = vrot.slane %v978, %v990
        %v992 = vlaneseq
        %v993 = vshrl.u32 %v992, 7
        %v994 = vsub.s32 3, %v993
        %v995 = vrot.slane %v978, %v994
        %v996 = vlaneseq
        %v997 = vshrl.u32 %v996, 7
        %v998 = vsub.s32 4, %v997
        %v999 = vrot.slane %v978, %v998
        %v1000 = vlaneseq
        %v1001 = vshrl.u32 %v1000, 7
        %v1002 = vsub.s32 5, %v1001
        %v1003 = vrot.slane %v978, %v1002
        %v1004 = vlaneseq
        %v1005 = vshrl.u32 %v1004, 7
        %v1006 = vsub.s32 6, %v1005
        %v1007 = vrot.slane %v978, %v1006
        %v1008 = vlaneseq
        %v1009 = vshrl.u32 %v1008, 7
        %v1010 = vsub.s32 7, %v1009
        %v1011 = vrot.slane %v978, %v1010
        %v1020 = vsub.f32 %v822, %v983
        %v1021 = vsub.f32 %v825, %v983
        %v1022 = vsub.f32 %v828, %v987
        %v1023 = vsub.f32 %v831, %v987
        %v1024 = vsub.f32 %v834, %v991
        %v1025 = vsub.f32 %v837, %v991
        %v1026 = vsub.f32 %v840, %v995
        %v1027 = vsub.f32 %v843, %v995
        %v1028 = vsub.f32 %v846, %v999
        %v1029 = vsub.f32 %v849, %v999
        %v1030 = vsub.f32 %v852, %v1003
        %v1031 = vsub.f32 %v855, %v1003
        %v1032 = vsub.f32 %v858, %v1007
        %v1033 = vsub.f32 %v861, %v1007
        %v1034 = vsub.f32 %v864, %v1011
        %v1035 = vsub.f32 %v867, %v1011
        %v1036 = vmul.f32 %v1020, 1.442695
        %v1037 = vpow.pop %v1036
        %v1038 = vmul.f32 %v1021, 1.442695
        %v1039 = vpow.pop %v1038
        %v1040 = vmul.f32 %v1022, 1.442695
        %v1041 = vpow.pop %v1040
        %v1042 = vmul.f32 %v1023, 1.442695
        %v1043 = vpow.pop %v1042
        %v1044 = vmul.f32 %v1024, 1.442695
        %v1045 = vpow.pop %v1044
        %v1046 = vmul.f32 %v1025, 1.442695
        %v1047 = vpow.pop %v1046
        %v1048 = vmul.f32 %v1026, 1.442695
        %v1049 = vpow.pop %v1048
        %v1050 = vmul.f32 %v1027, 1.442695
        %v1051 = vpow.pop %v1050
        %v1052 = vmul.f32 %v1028, 1.442695
        %v1053 = vpow.pop %v1052
        %v1054 = vmul.f32 %v1029, 1.442695
        %v1055 = vpow.pop %v1054
        %v1056 = vmul.f32 %v1030, 1.442695
        %v1057 = vpow.pop %v1056
        %v1058 = vmul.f32 %v1031, 1.442695
        %v1059 = vpow.pop %v1058
        %v1060 = vmul.f32 %v1032, 1.442695
        %v1061 = vpow.pop %v1060
        %v1062 = vmul.f32 %v1033, 1.442695
        %v1063 = vpow.pop %v1062
        %v1064 = vmul.f32 %v1034, 1.442695
        %v1065 = vpow.pop %v1064
        %v1066 = vmul.f32 %v1035, 1.442695
        %v1067 = vpow.pop %v1066
        %1084 = vset.pattern.permute.xlu0 0
        %1085 = vperm.xlu0 %1084, %v1037
        %v1086 = vpop.permute.xlu0 %1085
        %1087 = vset.pattern.permute.xlu0 0
        %1088 = vperm.xlu0 %1087, %v1039
        %v1089 = vpop.permute.xlu0 %1088
        %1090 = vset.pattern.permute.xlu0 0
        %1091 = vperm.xlu0 %1090, %v1041
        %v1092 = vpop.permute.xlu0 %1091
        %1093 = vset.pattern.permute.xlu0 0
        %1094 = vperm.xlu0 %1093, %v1043
        %v1095 = vpop.permute.xlu0 %1094
        %1096 = vset.pattern.permute.xlu0 0
        %1097 = vperm.xlu0 %1096, %v1045
        %v1098 = vpop.permute.xlu0 %1097
        %1099 = vset.pattern.permute.xlu0 0
        %1100 = vperm.xlu0 %1099, %v1047
        %v1101 = vpop.permute.xlu0 %1100
        %1102 = vset.pattern.permute.xlu0 0
        %1103 = vperm.xlu0 %1102, %v1049
        %v1104 = vpop.permute.xlu0 %1103
        %1105 = vset.pattern.permute.xlu0 0
        %1106 = vperm.xlu0 %1105, %v1051
        %v1107 = vpop.permute.xlu0 %1106
        %1108 = vset.pattern.permute.xlu0 0
        %1109 = vperm.xlu0 %1108, %v1053
        %v1110 = vpop.permute.xlu0 %1109
        %1111 = vset.pattern.permute.xlu0 0
        %1112 = vperm.xlu0 %1111, %v1055
        %v1113 = vpop.permute.xlu0 %1112
        %1114 = vset.pattern.permute.xlu0 0
        %1115 = vperm.xlu0 %1114, %v1057
        %v1116 = vpop.permute.xlu0 %1115
        %1117 = vset.pattern.permute.xlu0 0
        %1118 = vperm.xlu0 %1117, %v1059
        %v1119 = vpop.permute.xlu0 %1118
        %1120 = vset.pattern.permute.xlu0 0
        %1121 = vperm.xlu0 %1120, %v1061
        %v1122 = vpop.permute.xlu0 %1121
        %1123 = vset.pattern.permute.xlu0 0
        %1124 = vperm.xlu0 %1123, %v1063
        %v1125 = vpop.permute.xlu0 %1124
        %1126 = vset.pattern.permute.xlu0 0
        %1127 = vperm.xlu0 %1126, %v1065
        %v1128 = vpop.permute.xlu0 %1127
        %1129 = vset.pattern.permute.xlu0 0
        %1130 = vperm.xlu0 %1129, %v1067
        %v1131 = vpop.permute.xlu0 %1130
        %v1132 = vlaneseq
        %v1133 = vshrl.u32 %v1132, 7
        %v1134 = vsub.s32 %v885, %v1133
        %v1135 = vrot.slane %v1086, %v1134
        %v1136 = vlaneseq
        %v1137 = vshrl.u32 %v1136, 7
        %v1138 = vsub.s32 %v890, %v1137
        %v1139 = vrot.slane %v1089, %v1138
        %v1140 = vsel %vm895, %v1139, %v1135
        %v1141 = vlaneseq
        %v1142 = vshrl.u32 %v1141, 7
        %v1143 = vsub.s32 %v885, %v1142
        %v1144 = vrot.slane %v1092, %v1143
        %v1145 = vlaneseq
        %v1146 = vshrl.u32 %v1145, 7
        %v1147 = vsub.s32 %v890, %v1146
        %v1148 = vrot.slane %v1095, %v1147
        %v1149 = vsel %vm895, %v1148, %v1144
        %v1150 = vlaneseq
        %v1151 = vshrl.u32 %v1150, 7
        %v1152 = vsub.s32 %v885, %v1151
        %v1153 = vrot.slane %v1098, %v1152
        %v1154 = vlaneseq
        %v1155 = vshrl.u32 %v1154, 7
        %v1156 = vsub.s32 %v890, %v1155
        %v1157 = vrot.slane %v1101, %v1156
        %v1158 = vsel %vm895, %v1157, %v1153
        %v1159 = vlaneseq
        %v1160 = vshrl.u32 %v1159, 7
        %v1161 = vsub.s32 %v885, %v1160
        %v1162 = vrot.slane %v1104, %v1161
        %v1163 = vlaneseq
        %v1164 = vshrl.u32 %v1163, 7
        %v1165 = vsub.s32 %v890, %v1164
        %v1166 = vrot.slane %v1107, %v1165
        %v1167 = vsel %vm895, %v1166, %v1162
        %v1168 = vlaneseq
        %v1169 = vshrl.u32 %v1168, 7
        %v1170 = vsub.s32 %v885, %v1169
        %v1171 = vrot.slane %v1110, %v1170
        %v1172 = vlaneseq
        %v1173 = vshrl.u32 %v1172, 7
        %v1174 = vsub.s32 %v890, %v1173
        %v1175 = vrot.slane %v1113, %v1174
        %v1176 = vsel %vm895, %v1175, %v1171
        %v1177 = vlaneseq
        %v1178 = vshrl.u32 %v1177, 7
        %v1179 = vsub.s32 %v885, %v1178
        %v1180 = vrot.slane %v1116, %v1179
        %v1181 = vlaneseq
        %v1182 = vshrl.u32 %v1181, 7
        %v1183 = vsub.s32 %v890, %v1182
        %v1184 = vrot.slane %v1119, %v1183
        %v1185 = vsel %vm895, %v1184, %v1180
        %v1186 = vlaneseq
        %v1187 = vshrl.u32 %v1186, 7
        %v1188 = vsub.s32 %v885, %v1187
        %v1189 = vrot.slane %v1122, %v1188
        %v1190 = vlaneseq
        %v1191 = vshrl.u32 %v1190, 7
        %v1192 = vsub.s32 %v890, %v1191
        %v1193 = vrot.slane %v1125, %v1192
        %v1194 = vsel %vm895, %v1193, %v1189
        %v1195 = vlaneseq
        %v1196 = vshrl.u32 %v1195, 7
        %v1197 = vsub.s32 %v885, %v1196
        %v1198 = vrot.slane %v1128, %v1197
        %v1199 = vlaneseq
        %v1200 = vshrl.u32 %v1199, 7
        %v1201 = vsub.s32 %v890, %v1200
        %v1202 = vrot.slane %v1131, %v1201
        %v1203 = vsel %vm895, %v1202, %v1198
        %v1204 = vsel %vm960, %v1149, %v1140
        %v1205 = vsel %vm962, %v1158, %v1204
        %v1206 = vsel %vm964, %v1167, %v1205
        %v1207 = vsel %vm966, %v1176, %v1206
        %v1208 = vsel %vm968, %v1185, %v1207
        %v1209 = vsel %vm970, %v1194, %v1208
        %v1210 = vsel %vm972, %v1203, %v1209
        %v1212 = vsel %vm975, %v1210, 0.0
        %1213 = vadd.xlane.f32.xlu0 %v1212
        %v1214 = vpop.xlane.xlu0 %1213
        %v1216 = vlaneseq
        %v1217 = vshrl.u32 %v1216, 7
        %v1218 = vsub.s32 0, %v1217
        %v1219 = vrot.slane %v1214, %v1218
        %v1220 = vlaneseq
        %v1221 = vshrl.u32 %v1220, 7
        %v1222 = vsub.s32 1, %v1221
        %v1223 = vrot.slane %v1214, %v1222
        %v1224 = vlaneseq
        %v1225 = vshrl.u32 %v1224, 7
        %v1226 = vsub.s32 2, %v1225
        %v1227 = vrot.slane %v1214, %v1226
        %v1228 = vlaneseq
        %v1229 = vshrl.u32 %v1228, 7
        %v1230 = vsub.s32 3, %v1229
        %v1231 = vrot.slane %v1214, %v1230
        %v1232 = vlaneseq
        %v1233 = vshrl.u32 %v1232, 7
        %v1234 = vsub.s32 4, %v1233
        %v1235 = vrot.slane %v1214, %v1234
        %v1236 = vlaneseq
        %v1237 = vshrl.u32 %v1236, 7
        %v1238 = vsub.s32 5, %v1237
        %v1239 = vrot.slane %v1214, %v1238
        %v1240 = vlaneseq
        %v1241 = vshrl.u32 %v1240, 7
        %v1242 = vsub.s32 6, %v1241
        %v1243 = vrot.slane %v1214, %v1242
        %v1244 = vlaneseq
        %v1245 = vshrl.u32 %v1244, 7
        %v1246 = vsub.s32 7, %v1245
        %v1247 = vrot.slane %v1214, %v1246
        %v1256 = vrcp.pop %v1219
        %v1257 = vmul.f32 %v1037, %v1256
        %v1258 = vmul.f32 %v1039, %v1256
        %v1259 = vrcp.pop %v1223
        %v1260 = vmul.f32 %v1041, %v1259
        %v1261 = vmul.f32 %v1043, %v1259
        %v1262 = vrcp.pop %v1227
        %v1263 = vmul.f32 %v1045, %v1262
        %v1264 = vmul.f32 %v1047, %v1262
        %v1265 = vrcp.pop %v1231
        %v1266 = vmul.f32 %v1049, %v1265
        %v1267 = vmul.f32 %v1051, %v1265
        %v1268 = vrcp.pop %v1235
        %v1269 = vmul.f32 %v1053, %v1268
        %v1270 = vmul.f32 %v1055, %v1268
        %v1271 = vrcp.pop %v1239
        %v1272 = vmul.f32 %v1057, %v1271
        %v1273 = vmul.f32 %v1059, %v1271
        %v1274 = vrcp.pop %v1243
        %v1275 = vmul.f32 %v1061, %v1274
        %v1276 = vmul.f32 %v1063, %v1274
        %v1277 = vrcp.pop %v1247
        %v1278 = vmul.f32 %v1065, %v1277
        %v1279 = vmul.f32 %v1067, %v1277
        %1296 = vset.pattern.permute.xlu0 0
        %1297 = vperm.xlu0 %1296, %v1257
        %v1298 = vpop.permute.xlu0 %1297
        %1299 = vset.pattern.permute.xlu0 0
        %1300 = vperm.xlu0 %1299, %v1258
        %v1301 = vpop.permute.xlu0 %1300
        %1302 = vset.pattern.permute.xlu0 0
        %1303 = vperm.xlu0 %1302, %v1260
        %v1304 = vpop.permute.xlu0 %1303
        %1305 = vset.pattern.permute.xlu0 0
        %1306 = vperm.xlu0 %1305, %v1261
        %v1307 = vpop.permute.xlu0 %1306
        %1308 = vset.pattern.permute.xlu0 0
        %1309 = vperm.xlu0 %1308, %v1263
        %v1310 = vpop.permute.xlu0 %1309
        %1311 = vset.pattern.permute.xlu0 0
        %1312 = vperm.xlu0 %1311, %v1264
        %v1313 = vpop.permute.xlu0 %1312
        %1314 = vset.pattern.permute.xlu0 0
        %1315 = vperm.xlu0 %1314, %v1266
        %v1316 = vpop.permute.xlu0 %1315
        %1317 = vset.pattern.permute.xlu0 0
        %1318 = vperm.xlu0 %1317, %v1267
        %v1319 = vpop.permute.xlu0 %1318
        %1320 = vset.pattern.permute.xlu0 0
        %1321 = vperm.xlu0 %1320, %v1269
        %v1322 = vpop.permute.xlu0 %1321
        %1323 = vset.pattern.permute.xlu0 0
        %1324 = vperm.xlu0 %1323, %v1270
        %v1325 = vpop.permute.xlu0 %1324
        %1326 = vset.pattern.permute.xlu0 0
        %1327 = vperm.xlu0 %1326, %v1272
        %v1328 = vpop.permute.xlu0 %1327
        %1329 = vset.pattern.permute.xlu0 0
        %1330 = vperm.xlu0 %1329, %v1273
        %v1331 = vpop.permute.xlu0 %1330
        %1332 = vset.pattern.permute.xlu0 0
        %1333 = vperm.xlu0 %1332, %v1275
        %v1334 = vpop.permute.xlu0 %1333
        %1335 = vset.pattern.permute.xlu0 0
        %1336 = vperm.xlu0 %1335, %v1276
        %v1337 = vpop.permute.xlu0 %1336
        %1338 = vset.pattern.permute.xlu0 0
        %1339 = vperm.xlu0 %1338, %v1278
        %v1340 = vpop.permute.xlu0 %1339
        %1341 = vset.pattern.permute.xlu0 0
        %1342 = vperm.xlu0 %1341, %v1279
        %v1343 = vpop.permute.xlu0 %1342
        %v1344 = vlaneseq
        %v1345 = vshrl.u32 %v1344, 7
        %v1346 = vsub.s32 %v885, %v1345
        %v1347 = vrot.slane %v1298, %v1346
        %v1348 = vlaneseq
        %v1349 = vshrl.u32 %v1348, 7
        %v1350 = vsub.s32 %v890, %v1349
        %v1351 = vrot.slane %v1301, %v1350
        %v1352 = vsel %vm895, %v1351, %v1347
        %v1353 = vlaneseq
        %v1354 = vshrl.u32 %v1353, 7
        %v1355 = vsub.s32 %v885, %v1354
        %v1356 = vrot.slane %v1304, %v1355
        %v1357 = vlaneseq
        %v1358 = vshrl.u32 %v1357, 7
        %v1359 = vsub.s32 %v890, %v1358
        %v1360 = vrot.slane %v1307, %v1359
        %v1361 = vsel %vm895, %v1360, %v1356
        %v1362 = vlaneseq
        %v1363 = vshrl.u32 %v1362, 7
        %v1364 = vsub.s32 %v885, %v1363
        %v1365 = vrot.slane %v1310, %v1364
        %v1366 = vlaneseq
        %v1367 = vshrl.u32 %v1366, 7
        %v1368 = vsub.s32 %v890, %v1367
        %v1369 = vrot.slane %v1313, %v1368
        %v1370 = vsel %vm895, %v1369, %v1365
        %v1371 = vlaneseq
        %v1372 = vshrl.u32 %v1371, 7
        %v1373 = vsub.s32 %v885, %v1372
        %v1374 = vrot.slane %v1316, %v1373
        %v1375 = vlaneseq
        %v1376 = vshrl.u32 %v1375, 7
        %v1377 = vsub.s32 %v890, %v1376
        %v1378 = vrot.slane %v1319, %v1377
        %v1379 = vsel %vm895, %v1378, %v1374
        %v1380 = vlaneseq
        %v1381 = vshrl.u32 %v1380, 7
        %v1382 = vsub.s32 %v885, %v1381
        %v1383 = vrot.slane %v1322, %v1382
        %v1384 = vlaneseq
        %v1385 = vshrl.u32 %v1384, 7
        %v1386 = vsub.s32 %v890, %v1385
        %v1387 = vrot.slane %v1325, %v1386
        %v1388 = vsel %vm895, %v1387, %v1383
        %v1389 = vlaneseq
        %v1390 = vshrl.u32 %v1389, 7
        %v1391 = vsub.s32 %v885, %v1390
        %v1392 = vrot.slane %v1328, %v1391
        %v1393 = vlaneseq
        %v1394 = vshrl.u32 %v1393, 7
        %v1395 = vsub.s32 %v890, %v1394
        %v1396 = vrot.slane %v1331, %v1395
        %v1397 = vsel %vm895, %v1396, %v1392
        %v1398 = vlaneseq
        %v1399 = vshrl.u32 %v1398, 7
        %v1400 = vsub.s32 %v885, %v1399
        %v1401 = vrot.slane %v1334, %v1400
        %v1402 = vlaneseq
        %v1403 = vshrl.u32 %v1402, 7
        %v1404 = vsub.s32 %v890, %v1403
        %v1405 = vrot.slane %v1337, %v1404
        %v1406 = vsel %vm895, %v1405, %v1401
        %v1407 = vlaneseq
        %v1408 = vshrl.u32 %v1407, 7
        %v1409 = vsub.s32 %v885, %v1408
        %v1410 = vrot.slane %v1340, %v1409
        %v1411 = vlaneseq
        %v1412 = vshrl.u32 %v1411, 7
        %v1413 = vsub.s32 %v890, %v1412
        %v1414 = vrot.slane %v1343, %v1413
        %v1415 = vsel %vm895, %v1414, %v1410
        %v1416 = vsel %vm960, %v1361, %v1352
        %v1417 = vsel %vm962, %v1370, %v1416
        %v1418 = vsel %vm964, %v1379, %v1417
        %v1419 = vsel %vm966, %v1388, %v1418
        %v1420 = vsel %vm968, %v1397, %v1419
        %v1421 = vsel %vm970, %v1406, %v1420
        %v1422 = vsel %vm972, %v1415, %v1421
        %1424 = vst.msk [vmem:[%s374] sm:$0xff] %vm975, %v1422
        %v1441 = vmul.f32 %v376, %v1298
        %v1442 = vmul.f32 %v377, %v1301
        %v1443 = vmul.f32 %v378, %v1304
        %v1444 = vmul.f32 %v379, %v1307
        %v1445 = vmul.f32 %v380, %v1310
        %v1446 = vmul.f32 %v381, %v1313
        %v1447 = vmul.f32 %v382, %v1316
        %v1448 = vmul.f32 %v383, %v1319
        %v1449 = vmul.f32 %v384, %v1322
        %v1450 = vmul.f32 %v385, %v1325
        %v1451 = vmul.f32 %v386, %v1328
        %v1452 = vmul.f32 %v387, %v1331
        %v1453 = vmul.f32 %v388, %v1334
        %v1454 = vmul.f32 %v389, %v1337
        %v1455 = vmul.f32 %v390, %v1340
        %v1456 = vmul.f32 %v391, %v1343
        %v1457 = vsel %vm404, %v1441, 0.0
        %v1458 = vsel %vm404, %v1442, 0.0
        %v1459 = vadd.f32 %v1457, %v1458
        %v1460 = vrot.slane %v1459, 4
        %v1461 = vadd.f32 %v1459, %v1460
        %v1462 = vrot.slane %v1461, 2
        %v1463 = vadd.f32 %v1461, %v1462
        %v1464 = vrot.slane %v1463, 1
        %v1465 = vadd.f32 %v1463, %v1464
        %v1466 = vsel %vm404, %v1443, 0.0
        %v1467 = vsel %vm404, %v1444, 0.0
        %v1468 = vadd.f32 %v1466, %v1467
        %v1469 = vrot.slane %v1468, 4
        %v1470 = vadd.f32 %v1468, %v1469
        %v1471 = vrot.slane %v1470, 2
        %v1472 = vadd.f32 %v1470, %v1471
        %v1473 = vrot.slane %v1472, 1
        %v1474 = vadd.f32 %v1472, %v1473
        %v1475 = vsel %vm404, %v1445, 0.0
        %v1476 = vsel %vm404, %v1446, 0.0
        %v1477 = vadd.f32 %v1475, %v1476
        %v1478 = vrot.slane %v1477, 4
        %v1479 = vadd.f32 %v1477, %v1478
        %v1480 = vrot.slane %v1479, 2
        %v1481 = vadd.f32 %v1479, %v1480
        %v1482 = vrot.slane %v1481, 1
        %v1483 = vadd.f32 %v1481, %v1482
        %v1484 = vsel %vm404, %v1447, 0.0
        %v1485 = vsel %vm404, %v1448, 0.0
        %v1486 = vadd.f32 %v1484, %v1485
        %v1487 = vrot.slane %v1486, 4
        %v1488 = vadd.f32 %v1486, %v1487
        %v1489 = vrot.slane %v1488, 2
        %v1490 = vadd.f32 %v1488, %v1489
        %v1491 = vrot.slane %v1490, 1
        %v1492 = vadd.f32 %v1490, %v1491
        %v1493 = vsel %vm404, %v1449, 0.0
        %v1494 = vsel %vm404, %v1450, 0.0
        %v1495 = vadd.f32 %v1493, %v1494
        %v1496 = vrot.slane %v1495, 4
        %v1497 = vadd.f32 %v1495, %v1496
        %v1498 = vrot.slane %v1497, 2
        %v1499 = vadd.f32 %v1497, %v1498
        %v1500 = vrot.slane %v1499, 1
        %v1501 = vadd.f32 %v1499, %v1500
        %v1502 = vsel %vm404, %v1451, 0.0
        %v1503 = vsel %vm404, %v1452, 0.0
        %v1504 = vadd.f32 %v1502, %v1503
        %v1505 = vrot.slane %v1504, 4
        %v1506 = vadd.f32 %v1504, %v1505
        %v1507 = vrot.slane %v1506, 2
        %v1508 = vadd.f32 %v1506, %v1507
        %v1509 = vrot.slane %v1508, 1
        %v1510 = vadd.f32 %v1508, %v1509
        %v1511 = vsel %vm404, %v1453, 0.0
        %v1512 = vsel %vm404, %v1454, 0.0
        %v1513 = vadd.f32 %v1511, %v1512
        %v1514 = vrot.slane %v1513, 4
        %v1515 = vadd.f32 %v1513, %v1514
        %v1516 = vrot.slane %v1515, 2
        %v1517 = vadd.f32 %v1515, %v1516
        %v1518 = vrot.slane %v1517, 1
        %v1519 = vadd.f32 %v1517, %v1518
        %v1520 = vsel %vm404, %v1455, 0.0
        %v1521 = vsel %vm404, %v1456, 0.0
        %v1522 = vadd.f32 %v1520, %v1521
        %v1523 = vrot.slane %v1522, 4
        %v1524 = vadd.f32 %v1522, %v1523
        %v1525 = vrot.slane %v1524, 2
        %v1526 = vadd.f32 %v1524, %v1525
        %v1527 = vrot.slane %v1526, 1
        %v1528 = vadd.f32 %v1526, %v1527
        %v1537 = vsel %vm960, %v1474, %v1465
        %v1538 = vsel %vm962, %v1483, %v1537
        %v1539 = vsel %vm964, %v1492, %v1538
        %v1540 = vsel %vm966, %v1501, %v1539
        %v1541 = vsel %vm968, %v1510, %v1540
        %v1542 = vsel %vm970, %v1519, %v1541
        %v1543 = vsel %vm972, %v1528, %v1542
        %1545 = vst.msk [vmem:[%s367] sm:$0xff] %vm404, %v1543
        %s1546 = sand.u32 %s176, 1
        %s1547 = scalar_lea.sflag [#allocation4], %s1546
        %s1548 = sand.u32 %s176, 1
        %s1549 = smul.addr %s1548, 8
        %s1550 = scalar_lea.vmem [#allocation10], %s1549
        %s1551 = sand.u32 %s202, 1
        %s1552 = scalar_lea.sflag [#allocation12], %s1551
        %s1553 = sand.u32 %s202, 1
        %s1554 = smul.addr %s1553, 8
        %s1555 = scalar_lea.vmem [#allocation11], %s1554
        // Predicated region
        $region61: #{tpu_custom_call.1} parent=43 // pred_check
          %p1556 = pneg %p186
        $region62: #{tpu_custom_call.1} parent=43 // pred_check_branch
          %1558 = sbr.rel (%p1556) target = $region64
        $region63: #{tpu_custom_call.1} parent=43 // pred_region
          %s1560 = ssub.s32 128, 128
          %1561 = vsyncadd %s1547, %s1560
          %s1562 = smul.addr %s32, 128
          %s1563 = scalar_lea.hbm %s6, %s1562
          %s1565 = sshll.u32 %s1550, 4
          %s1566 = int_to_ptr.vmem [resolvable:$true] %s1565
          %1568 = dma.vmem_to_hbm [thread:$0]  %s1566, 128, %s1563, %s1547
        $region64: #{tpu_custom_call.1} parent=43 // pred_fallthru
          _
        // Predicated region
        $region65: #{tpu_custom_call.1} parent=43 // pred_check
          %p1569 = pneg %p212
        $region66: #{tpu_custom_call.1} parent=43 // pred_check_branch
          %1571 = sbr.rel (%p1569) target = $region68
        $region67: #{tpu_custom_call.1} parent=43 // pred_region
          %s1573 = ssub.s32 128, 128
          %1574 = vsyncadd %s1552, %s1573
          %s1575 = smul.addr %s32, 128
          %s1576 = scalar_lea.hbm %s7, %s1575
          %s1578 = sshll.u32 %s1555, 4
          %s1579 = int_to_ptr.vmem [resolvable:$true] %s1578
          %1581 = dma.vmem_to_hbm [thread:$0]  %s1579, 128, %s1576, %s1552
        $region68: #{tpu_custom_call.1} parent=43 // pred_fallthru
          _
      $region44: #{tpu_custom_call.1} parent=5 // pred_fallthru
        _
      %p1582 = scmp.le.s32.totalorder 2, %s27
      // Predicated region
      $region69: #{tpu_custom_call.1} parent=5 // pred_check
        %p1583 = pneg %p1582
      $region70: #{tpu_custom_call.1} parent=5 // pred_check_branch
        %1585 = sbr.rel (%p1583) target = $region72
      $region71: #{tpu_custom_call.1} parent=5 // pred_region
        %s1586 = ssub.s32 %s27, 2
        // Predicated region
        $region73: #{tpu_custom_call.1} parent=71 // pred_check
          %p1587 = pneg %p192
        $region74: #{tpu_custom_call.1} parent=71 // pred_check_branch
          %1589 = sbr.rel (%p1587) target = $region76
        $region75: #{tpu_custom_call.1} parent=71 // pred_region
          %s1590 = sand.u32 %s177, 1
          %s1591 = scalar_lea.sflag [#allocation4], %s1590
          %s1592 = sand.u32 %s177, 1
          %s1593 = smul.addr %s1592, 8
          %s1594 = scalar_lea.vmem [#allocation10], %s1593
          %1595 = dma.done %s1591, 128
        $region76: #{tpu_custom_call.1} parent=71 // pred_fallthru
          _
        // Predicated region
        $region77: #{tpu_custom_call.1} parent=71 // pred_check
          %p1596 = pneg %p218
        $region78: #{tpu_custom_call.1} parent=71 // pred_check_branch
          %1598 = sbr.rel (%p1596) target = $region80
        $region79: #{tpu_custom_call.1} parent=71 // pred_region
          %s1599 = sand.u32 %s203, 1
          %s1600 = scalar_lea.sflag [#allocation12], %s1599
          %s1601 = sand.u32 %s203, 1
          %s1602 = smul.addr %s1601, 8
          %s1603 = scalar_lea.vmem [#allocation11], %s1602
          %1604 = dma.done %s1600, 128
        $region80: #{tpu_custom_call.1} parent=71 // pred_fallthru
          _
      $region72: #{tpu_custom_call.1} parent=5 // pred_fallthru
        _
    $region6: #{tpu_custom_call.1} parent=1 // loop_footer
      %s31 = sadd.s32 1, %s27
    $region7: #{tpu_custom_call.1} parent=1 // loop_footer_branch
      %26 = sbr.rel target = $region3
    $region8: #{tpu_custom_call.1} parent=1 // loop_exit
      _
    %1605 = vsyncpa [#allocation3], 1
    %s1606 = scalar_lea.sflag [#allocation3], 1
    %1607 = vsyncpa %s1606, 1
    %1608 = vsyncpa [#allocation6], 1
    %s1609 = scalar_lea.sflag [#allocation6], 1
    %1610 = vsyncpa %s1609, 1
    %1611 = vsyncpa [#allocation9], 1
    %1612 = vsyncpa [#allocation4], 1
    %s1613 = scalar_lea.sflag [#allocation4], 1
    %1614 = vsyncpa %s1613, 1
    %1615 = vsyncpa [#allocation12], 1
    %s1616 = scalar_lea.sflag [#allocation12], 1
    %1617 = vsyncpa %s1616, 1

</llo_original>
